<compile_context>
chip_gen: v7x
topology: tpu7x:2x2x1
jax: 0.10.0
libtpu: 0.0.40
codegen_flags: <defaults>
</compile_context>

<pallas_src>
import functools

import jax
import jax.numpy as jnp
from jax import lax
from jax.experimental import pallas as pl
from jax.experimental.pallas import tpu as pltpu


def _round_up(x, m):
    return ((x + m - 1) // m) * m


def _tensorcores_per_chip():
    """2 TensorCores only on v7x-class parts; v5e/v6e have 1."""
    try:
        kind = jax.devices()[0].device_kind.lower()
    except Exception:
        return 1
    return 2 if "v7" in kind else 1


def _choose_block_t(T):
    """Pick timesteps-per-grid-step from {32,16,8}, minimizing time padding
    (every padded step is pure serial loss); tie-break toward larger blocks."""
    best_tc, best_tp = 8, _round_up(max(T, 1), 8)
    for tc in (16, 32):
        tp = _round_up(max(T, 1), tc)
        if tp < best_tp or (tp == best_tp and tc > best_tc):
            best_tc, best_tp = tc, tp
    return best_tc, best_tp


def _lstm_kernel(xg_ref, whh_ref, out_ref, h_sc, c_sc, hstage,
                 *, hidden_pad, block_t, batch_block, unroll):
    """One grid step == Tc timesteps of the recurrence.

    xg_ref:  (Tc, B_blk, 4*Hp) bf16  precomputed x @ W_ih^T + (b_ih + b_hh)
    whh_ref: (Hp, 4*Hp)        bf16  hidden->gates weights (resident)
    out_ref: (B_blk, Tc, Hp)   f32   lstm_out block, batch-first
    h_sc, c_sc: (B_blk, Hp)    f32   VMEM scratch carrying the recurrence
    hstage:  (Tc, B_blk, Hp)   f32   time-major staging buffer for h
    """
    Hp = hidden_pad

    # New batch slab starts -> reset the recurrent state.
    @pl.when(pl.program_id(1) == 0)
    def _():
        h_sc[...] = jnp.zeros_like(h_sc)
        c_sc[...] = jnp.zeros_like(c_sc)

    w = whh_ref[...]                                   # (Hp, 4Hp) bf16, resident

    def step(i, carry):
        h, c = carry
        # gates = (x @ W_ih^T + b) + h @ W_hh^T ; bf16 MXU, f32 accumulation.
        gates = xg_ref[i].astype(jnp.float32) + jnp.dot(
            h.astype(jnp.bfloat16), w, preferred_element_type=jnp.float32)

        # PyTorch gate order: i, f, g, o (lane-aligned slices, Hp % 128 == 0).
        # sigmoid(x) = 0.5*tanh(0.5*x) + 0.5  -> one EUP op per gate.
        i_g = 0.5 * jnp.tanh(0.5 * gates[:, 0 * Hp:1 * Hp]) + 0.5
        f_g = 0.5 * jnp.tanh(0.5 * gates[:, 1 * Hp:2 * Hp]) + 0.5
        g_g = jnp.tanh(gates[:, 2 * Hp:3 * Hp])
        o_g = 0.5 * jnp.tanh(0.5 * gates[:, 3 * Hp:4 * Hp]) + 0.5

        c = f_g * c + i_g * g_g
        h = o_g * jnp.tanh(c)

        # Full-tile store into the time-major staging scratch (no masked vst).
        hstage[i] = h
        return (h, c)

    h, c = lax.fori_loop(0, block_t, step, (h_sc[...], c_sc[...]),
                         unroll=unroll)
    h_sc[...] = h
    c_sc[...] = c

    # Block-level batch-first writeback: sublane-strided reads of the staging
    # scratch + full-lane stores (once per block, not per timestep).
    for b in range(batch_block):
        out_ref[b] = hstage[:, b, :].astype(out_ref.dtype)


def vanilla_lstm_forward(tokens, params):
    """tokens: (B, T) int32.  Returns (out (B, 1), lstm_out (B, T, H))."""
    emb_table = params["embedding"]          # (V, E)
    w_ih = params["w_ih"]                    # (4H, E)
    w_hh = params["w_hh"]                    # (4H, H)
    b_ih = params["b_ih"]                    # (4H,)
    b_hh = params["b_hh"]                    # (4H,)
    w_lin = params["w_lin"]                  # (1, H)
    b_lin = params["b_lin"]                  # (1,)

    B, T = tokens.shape
    H = w_hh.shape[1]
    E = w_ih.shape[1]

    # --- padding / tiling decisions -------------------------------------
    Hp = _round_up(H, 128)                   # lane-aligned hidden size
    Bp = _round_up(B, 8)                     # sublane-aligned batch
    Tc, Tp = _choose_block_t(T)              # timesteps per grid step (min padding)

    # Batch split only when the chip actually has 2 TensorCores (v7x).
    n_cores = _tensorcores_per_chip()
    n_bsplit = 2 if (n_cores >= 2 and Bp >= 16 and Bp % 16 == 0) else 1
    B_blk = Bp // n_bsplit

    # --- per-gate zero padding of the LSTM parameters --------------------
    # Zero padding keeps padded h/c lanes exactly 0 for all timesteps (this
    # invariant also holds in bf16, since 0 stays 0).
    def _pad_gate_rows(w):                   # (4H, X) -> (4*Hp, X)
        x_dim = w.shape[1]
        w4 = w.reshape(4, H, x_dim)
        w4 = jnp.pad(w4, ((0, 0), (0, Hp - H), (0, 0)))
        return w4.reshape(4 * Hp, x_dim)

    wih_p = _pad_gate_rows(w_ih).astype(jnp.float32)             # (4Hp, E)
    whh_p = jnp.pad(_pad_gate_rows(w_hh), ((0, 0), (0, Hp - H))) # (4Hp, Hp)
    whh_t = whh_p.T.astype(jnp.bfloat16)                         # (Hp, 4Hp) bf16
    bias_p = jnp.pad((b_ih + b_hh).reshape(4, H),
                     ((0, 0), (0, Hp - H))).reshape(4 * Hp).astype(jnp.float32)

    # --- embedding gather (time-major, no transpose pass) ---------------
    tokens_p = jnp.pad(tokens, ((0, Bp - B), (0, Tp - T)))       # (Bp, Tp)
    emb_tm = emb_table[tokens_p.T]                               # (Tp, Bp, E)
    # TODO(synk): nn.Dropout is identity in eval mode; training-mode random
    # mask (pltpu.prng_seed/prng_random_bits) not implemented.

    # --- hoisted input projection: ONE large bf16 matmul, xg stored bf16 --
    xg = jnp.dot(emb_tm.reshape(Tp * Bp, E).astype(jnp.bfloat16),
                 wih_p.T.astype(jnp.bfloat16),
                 preferred_element_type=jnp.float32) + bias_p[None, :]
    xg = xg.astype(jnp.bfloat16).reshape(Tp, Bp, 4 * Hp)         # (Tp, Bp, 4Hp)

    # Inner-loop unroll: full for small Hp, capped for large Hp (vreg pressure).
    unroll = Tc if Hp < 512 else min(Tc, 8)
    kernel = functools.partial(_lstm_kernel, hidden_pad=Hp, block_t=Tc,
                               batch_block=B_blk, unroll=unroll)

    # Resident recurrent weight; single-buffer it when large (v7x 64 MiB VMEM).
    whh_bytes = Hp * 4 * Hp * 2
    if whh_bytes > (4 << 20):
        whh_spec = pl.BlockSpec((Hp, 4 * Hp), lambda b, t: (0, 0),
                                pipeline_mode=pl.Buffered(1))
        whh_buffers = 1
    else:
        whh_spec = pl.BlockSpec((Hp, 4 * Hp), lambda b, t: (0, 0))
        whh_buffers = 2

    # Explicit VMEM budget: resident weight + double-buffered xg/out + scratch.
    vmem_needed = (whh_buffers * whh_bytes
                   + 2 * Tc * B_blk * 4 * Hp * 2                 # xg (bf16)
                   + 2 * B_blk * Tc * Hp * 4                     # out (f32)
                   + (2 * B_blk * Hp + Tc * B_blk * Hp) * 4)     # h/c/hstage
    vmem_limit = max(32 << 20, min(int(vmem_needed * 1.25) + (2 << 20), 96 << 20))

    if n_bsplit > 1:
        # Megacore: shard the batch axis across the 2 TensorCores (v7x only).
        dim_sems = (pltpu.CORE_PARALLEL, pltpu.ARBITRARY)
    else:
        dim_sems = ("arbitrary", "arbitrary")

    lstm_out_p = pl.pallas_call(
        kernel,
        out_shape=jax.ShapeDtypeStruct((Bp, Tp, Hp), jnp.float32),
        grid_spec=pltpu.PrefetchScalarGridSpec(
            num_scalar_prefetch=0,
            grid=(n_bsplit, Tp // Tc),
            in_specs=[
                # precomputed gates for Tc timesteps, time-major, bf16
                pl.BlockSpec((Tc, B_blk, 4 * Hp), lambda b, t: (t, b, 0)),
                # recurrent weight, resident (constant block index)
                whh_spec,
            ],
            # lstm_out written batch-first directly (no wrapper transpose pass)
            out_specs=pl.BlockSpec((B_blk, Tc, Hp), lambda b, t: (b, t, 0)),
            scratch_shapes=[
                pltpu.VMEM((B_blk, Hp), jnp.float32),            # h state
                pltpu.VMEM((B_blk, Hp), jnp.float32),            # c state
                pltpu.VMEM((Tc, B_blk, Hp), jnp.float32),        # h staging
            ],
        ),
        compiler_params=pltpu.CompilerParams(
            dimension_semantics=dim_sems,
            vmem_limit_bytes=vmem_limit,
        ),
    )(xg, whh_t)

    # NOTE: this slice materializes a copy whenever padding exists; keep
    # B%8==0, H%128==0, T%Tc==0 configurations padding-free to avoid it.
    lstm_out = lstm_out_p[:B, :T, :H]                            # (B, T, H)
    h_n = lstm_out_p[:B, T - 1, :H]                              # (B, H) == h_n
    out = h_n @ w_lin.T.astype(jnp.float32) + b_lin              # (B, 1)
    return out, lstm_out


def _reference_forward(tokens, params):
    """Pure-JAX f32 reference for correctness check."""
    emb = params["embedding"][tokens].astype(jnp.float32)        # (B, T, E)
    H = params["w_hh"].shape[1]
    B, T, _ = emb.shape
    wih_t = params["w_ih"].T
    whh_t = params["w_hh"].T
    bias = params["b_ih"] + params["b_hh"]

    def step(carry, x_t):
        h, c = carry
        gates = x_t @ wih_t + h @ whh_t + bias
        i = jax.nn.sigmoid(gates[:, 0 * H:1 * H])
        f = jax.nn.sigmoid(gates[:, 1 * H:2 * H])
        g = jnp.tanh(gates[:, 2 * H:3 * H])
        o = jax.nn.sigmoid(gates[:, 3 * H:4 * H])
        c = f * c + i * g
        h = o * jnp.tanh(c)
        return (h, c), h

    init = (jnp.zeros((B, H), jnp.float32), jnp.zeros((B, H), jnp.float32))
    (h_n, _), hs = jax.lax.scan(step, init, jnp.transpose(emb, (1, 0, 2)))
    lstm_out = jnp.transpose(hs, (1, 0, 2))
    out = h_n @ params["w_lin"].T + params["b_lin"]
    return out, lstm_out


def init_params(key, vocab_size, embedding_size, hidden_size):
    ks = jax.random.split(key, 7)
    H, E = hidden_size, embedding_size
    scale = 0.1
    return {
        "embedding": scale * jax.random.normal(ks[0], (vocab_size, E), jnp.float32),
        "w_ih": scale * jax.random.normal(ks[1], (4 * H, E), jnp.float32),
        "w_hh": scale * jax.random.normal(ks[2], (4 * H, H), jnp.float32),
        "b_ih": scale * jax.random.normal(ks[3], (4 * H,), jnp.float32),
        "b_hh": scale * jax.random.normal(ks[4], (4 * H,), jnp.float32),
        "w_lin": scale * jax.random.normal(ks[5], (1, H), jnp.float32),
        "b_lin": scale * jax.random.normal(ks[6], (1,), jnp.float32),
    }


if __name__ == "__main__":
    B, T = 2, 8
    vocab_size, embedding_size, hidden_size = 16, 32, 32

    key = jax.random.PRNGKey(0)
    k_tok, k_par = jax.random.split(key)
    tokens = jax.random.randint(k_tok, (B, T), 0, vocab_size, dtype=jnp.int32)
    params = init_params(k_par, vocab_size, embedding_size, hidden_size)

    out, lstm_out = jax.jit(vanilla_lstm_forward)(tokens, params)
    jax.block_until_ready((out, lstm_out))

    ref_out, ref_lstm_out = _reference_forward(tokens, params)
    assert out.shape == (B, 1) and lstm_out.shape == (B, T, hidden_size)
    # bf16 weights/xg inside the kernel -> slightly looser tolerance vs f32 ref.
    assert jnp.allclose(out, ref_out, atol=2e-2, rtol=2e-2)
    assert jnp.allclose(lstm_out, ref_lstm_out, atol=2e-2, rtol=2e-2)

    print("KERNEL_OK")
</pallas_src>

<mosaic_0001>
module attributes {stable_mosaic.version = 11 : i64} {
  func.func @_lstm_kernel(%arg0: i32, %arg1: i32, %arg2: memref<8x8x512xbf16, #tpu.memory_space<vmem>>, %arg3: memref<128x512xbf16, #tpu.memory_space<vmem>>, %arg4: memref<8x8x128xf32, #tpu.memory_space<vmem>>, %arg5: memref<8x128xf32, #tpu.memory_space<vmem>>, %arg6: memref<8x128xf32, #tpu.memory_space<vmem>>, %arg7: memref<8x8x128xf32, #tpu.memory_space<vmem>>) attributes {dimension_semantics = [#tpu.dimension_semantics<arbitrary>, #tpu.dimension_semantics<arbitrary>], iteration_bounds = array<i64: 1, 1>, scalar_prefetch = 0 : i64, scratch_operands = 3 : i64, tpu.core_type = #tpu.core_type<tc>, window_params = [{transform_indices = @transform_0, window_bounds = array<i64: 8, 8, 512>}, {pipeline_mode = #tpu.pipeline_mode<synchronous>, transform_indices = @transform_1, window_bounds = array<i64: 128, 512>}, {transform_indices = @transform_2, window_bounds = array<i64: 8, 8, 128>}]} {
    %c0_i32 = arith.constant 0 : i32
    %0 = arith.cmpi eq, %arg1, %c0_i32 : i32
    %1 = arith.extui %0 : i1 to i32
    %c0_i32_0 = arith.constant 0 : i32
    %2 = arith.cmpi ne, %1, %c0_i32_0 : i32
    scf.if %2 {
      %cst_163 = arith.constant 0.000000e+00 : f32
      %384 = vector.broadcast %cst_163 : f32 to vector<8x128xf32>
      %c0_164 = arith.constant 0 : index
      %c0_165 = arith.constant 0 : index
      %385 = vector.load %arg5[%c0_164, %c0_165] : memref<8x128xf32, #tpu.memory_space<vmem>>, vector<8x128xf32>
      tpu.vector_store %arg5[%c0_164, %c0_165], %384 {strides = array<i32>} : memref<8x128xf32, #tpu.memory_space<vmem>>, vector<8x128xf32>,
      %cst_166 = arith.constant 0.000000e+00 : f32
      %386 = vector.broadcast %cst_166 : f32 to vector<8x128xf32>
      %c0_167 = arith.constant 0 : index
      %c0_168 = arith.constant 0 : index
      %387 = vector.load %arg6[%c0_167, %c0_168] : memref<8x128xf32, #tpu.memory_space<vmem>>, vector<8x128xf32>
      tpu.vector_store %arg6[%c0_167, %c0_168], %386 {strides = array<i32>} : memref<8x128xf32, #tpu.memory_space<vmem>>, vector<8x128xf32>,
    } else {
    }
    %c0 = arith.constant 0 : index
    %c0_1 = arith.constant 0 : index
    %3 = vector.load %arg3[%c0, %c0_1] : memref<128x512xbf16, #tpu.memory_space<vmem>>, vector<128x512xbf16>
    %c0_2 = arith.constant 0 : index
    %c0_3 = arith.constant 0 : index
    %4 = vector.load %arg5[%c0_2, %c0_3] : memref<8x128xf32, #tpu.memory_space<vmem>>, vector<8x128xf32>
    %c0_4 = arith.constant 0 : index
    %c0_5 = arith.constant 0 : index
    %5 = vector.load %arg6[%c0_4, %c0_5] : memref<8x128xf32, #tpu.memory_space<vmem>>, vector<8x128xf32>
    %c0_i32_6 = arith.constant 0 : i32
    %6 = arith.index_cast %c0_i32_6 : i32 to index
    %c0_7 = arith.constant 0 : index
    %c0_8 = arith.constant 0 : index
    %7 = vector.load %arg2[%6, %c0_7, %c0_8] : memref<8x8x512xbf16, #tpu.memory_space<vmem>>, vector<1x8x512xbf16>
    %8 = vector.shape_cast %7 : vector<1x8x512xbf16> to vector<8x512xbf16>
    %9 = arith.extf %8 : vector<8x512xbf16> to vector<8x512xf32>
    %10 = arith.truncf %4 : vector<8x128xf32> to vector<8x128xbf16>
    %cst = arith.constant dense<0.000000e+00> : vector<8x512xf32>
    %11 = tpu.matmul %10, %3, %cst {dimension_numbers = #tpu.dot_dimension_numbers<[1], [0], [0], [1], [0, 0, 1, 1], [], []>} : vector<8x128xbf16>, vector<128x512xbf16>, vector<8x512xf32> -> vector<8x512xf32>
    %12 = arith.addf %9, %11 : vector<8x512xf32>
    %13 = vector.extract_strided_slice %12 {offsets = [0, 0], sizes = [8, 128], strides = [1, 1]} : vector<8x512xf32> to vector<8x128xf32>
    %cst_9 = arith.constant 5.000000e-01 : f32
    %14 = vector.broadcast %cst_9 : f32 to vector<8x128xf32>
    %15 = arith.mulf %14, %13 : vector<8x128xf32>
    %16 = math.tanh %15 : vector<8x128xf32>
    %cst_10 = arith.constant 5.000000e-01 : f32
    %17 = vector.broadcast %cst_10 : f32 to vector<8x128xf32>
    %18 = arith.mulf %17, %16 : vector<8x128xf32>
    %cst_11 = arith.constant 5.000000e-01 : f32
    %19 = vector.broadcast %cst_11 : f32 to vector<8x128xf32>
    %20 = arith.addf %18, %19 : vector<8x128xf32>
    %21 = vector.extract_strided_slice %12 {offsets = [0, 128], sizes = [8, 128], strides = [1, 1]} : vector<8x512xf32> to vector<8x128xf32>
    %cst_12 = arith.constant 5.000000e-01 : f32
    %22 = vector.broadcast %cst_12 : f32 to vector<8x128xf32>
    %23 = arith.mulf %22, %21 : vector<8x128xf32>
    %24 = math.tanh %23 : vector<8x128xf32>
    %cst_13 = arith.constant 5.000000e-01 : f32
    %25 = vector.broadcast %cst_13 : f32 to vector<8x128xf32>
    %26 = arith.mulf %25, %24 : vector<8x128xf32>
    %cst_14 = arith.constant 5.000000e-01 : f32
    %27 = vector.broadcast %cst_14 : f32 to vector<8x128xf32>
    %28 = arith.addf %26, %27 : vector<8x128xf32>
    %29 = vector.extract_strided_slice %12 {offsets = [0, 256], sizes = [8, 128], strides = [1, 1]} : vector<8x512xf32> to vector<8x128xf32>
    %30 = math.tanh %29 : vector<8x128xf32>
    %31 = vector.extract_strided_slice %12 {offsets = [0, 384], sizes = [8, 128], strides = [1, 1]} : vector<8x512xf32> to vector<8x128xf32>
    %cst_15 = arith.constant 5.000000e-01 : f32
    %32 = vector.broadcast %cst_15 : f32 to vector<8x128xf32>
    %33 = arith.mulf %32, %31 : vector<8x128xf32>
    %34 = math.tanh %33 : vector<8x128xf32>
    %cst_16 = arith.constant 5.000000e-01 : f32
    %35 = vector.broadcast %cst_16 : f32 to vector<8x128xf32>
    %36 = arith.mulf %35, %34 : vector<8x128xf32>
    %cst_17 = arith.constant 5.000000e-01 : f32
    %37 = vector.broadcast %cst_17 : f32 to vector<8x128xf32>
    %38 = arith.addf %36, %37 : vector<8x128xf32>
    %39 = arith.mulf %28, %5 : vector<8x128xf32>
    %40 = arith.mulf %20, %30 : vector<8x128xf32>
    %41 = arith.addf %39, %40 : vector<8x128xf32>
    %42 = math.tanh %41 : vector<8x128xf32>
    %43 = arith.mulf %38, %42 : vector<8x128xf32>
    %44 = arith.index_cast %c0_i32_6 : i32 to index
    %c0_18 = arith.constant 0 : index
    %c0_19 = arith.constant 0 : index
    %45 = vector.load %arg7[%44, %c0_18, %c0_19] : memref<8x8x128xf32, #tpu.memory_space<vmem>>, vector<1x8x128xf32>
    %46 = vector.shape_cast %45 : vector<1x8x128xf32> to vector<8x128xf32>
    %47 = vector.shape_cast %43 : vector<8x128xf32> to vector<1x8x128xf32>
    tpu.vector_store %arg7[%44, %c0_18, %c0_19], %47 {strides = array<i32>} : memref<8x8x128xf32, #tpu.memory_space<vmem>>, vector<1x8x128xf32>,
    %c1_i32 = arith.constant 1 : i32
    %48 = arith.index_cast %c1_i32 : i32 to index
    %c0_20 = arith.constant 0 : index
    %c0_21 = arith.constant 0 : index
    %49 = vector.load %arg2[%48, %c0_20, %c0_21] : memref<8x8x512xbf16, #tpu.memory_space<vmem>>, vector<1x8x512xbf16>
    %50 = vector.shape_cast %49 : vector<1x8x512xbf16> to vector<8x512xbf16>
    %51 = arith.extf %50 : vector<8x512xbf16> to vector<8x512xf32>
    %52 = arith.truncf %43 : vector<8x128xf32> to vector<8x128xbf16>
    %cst_22 = arith.constant dense<0.000000e+00> : vector<8x512xf32>
    %53 = tpu.matmul %52, %3, %cst_22 {dimension_numbers = #tpu.dot_dimension_numbers<[1], [0], [0], [1], [0, 0, 1, 1], [], []>} : vector<8x128xbf16>, vector<128x512xbf16>, vector<8x512xf32> -> vector<8x512xf32>
    %54 = arith.addf %51, %53 : vector<8x512xf32>
    %55 = vector.extract_strided_slice %54 {offsets = [0, 0], sizes = [8, 128], strides = [1, 1]} : vector<8x512xf32> to vector<8x128xf32>
    %cst_23 = arith.constant 5.000000e-01 : f32
    %56 = vector.broadcast %cst_23 : f32 to vector<8x128xf32>
    %57 = arith.mulf %56, %55 : vector<8x128xf32>
    %58 = math.tanh %57 : vector<8x128xf32>
    %cst_24 = arith.constant 5.000000e-01 : f32
    %59 = vector.broadcast %cst_24 : f32 to vector<8x128xf32>
    %60 = arith.mulf %59, %58 : vector<8x128xf32>
    %cst_25 = arith.constant 5.000000e-01 : f32
    %61 = vector.broadcast %cst_25 : f32 to vector<8x128xf32>
    %62 = arith.addf %60, %61 : vector<8x128xf32>
    %63 = vector.extract_strided_slice %54 {offsets = [0, 128], sizes = [8, 128], strides = [1, 1]} : vector<8x512xf32> to vector<8x128xf32>
    %cst_26 = arith.constant 5.000000e-01 : f32
    %64 = vector.broadcast %cst_26 : f32 to vector<8x128xf32>
    %65 = arith.mulf %64, %63 : vector<8x128xf32>
    %66 = math.tanh %65 : vector<8x128xf32>
    %cst_27 = arith.constant 5.000000e-01 : f32
    %67 = vector.broadcast %cst_27 : f32 to vector<8x128xf32>
    %68 = arith.mulf %67, %66 : vector<8x128xf32>
    %cst_28 = arith.constant 5.000000e-01 : f32
    %69 = vector.broadcast %cst_28 : f32 to vector<8x128xf32>
    %70 = arith.addf %68, %69 : vector<8x128xf32>
    %71 = vector.extract_strided_slice %54 {offsets = [0, 256], sizes = [8, 128], strides = [1, 1]} : vector<8x512xf32> to vector<8x128xf32>
    %72 = math.tanh %71 : vector<8x128xf32>
    %73 = vector.extract_strided_slice %54 {offsets = [0, 384], sizes = [8, 128], strides = [1, 1]} : vector<8x512xf32> to vector<8x128xf32>
    %cst_29 = arith.constant 5.000000e-01 : f32
    %74 = vector.broadcast %cst_29 : f32 to vector<8x128xf32>
    %75 = arith.mulf %74, %73 : vector<8x128xf32>
    %76 = math.tanh %75 : vector<8x128xf32>
    %cst_30 = arith.constant 5.000000e-01 : f32
    %77 = vector.broadcast %cst_30 : f32 to vector<8x128xf32>
    %78 = arith.mulf %77, %76 : vector<8x128xf32>
    %cst_31 = arith.constant 5.000000e-01 : f32
    %79 = vector.broadcast %cst_31 : f32 to vector<8x128xf32>
    %80 = arith.addf %78, %79 : vector<8x128xf32>
    %81 = arith.mulf %70, %41 : vector<8x128xf32>
    %82 = arith.mulf %62, %72 : vector<8x128xf32>
    %83 = arith.addf %81, %82 : vector<8x128xf32>
    %84 = math.tanh %83 : vector<8x128xf32>
    %85 = arith.mulf %80, %84 : vector<8x128xf32>
    %86 = arith.index_cast %c1_i32 : i32 to index
    %c0_32 = arith.constant 0 : index
    %c0_33 = arith.constant 0 : index
    %87 = vector.load %arg7[%86, %c0_32, %c0_33] : memref<8x8x128xf32, #tpu.memory_space<vmem>>, vector<1x8x128xf32>
    %88 = vector.shape_cast %87 : vector<1x8x128xf32> to vector<8x128xf32>
    %89 = vector.shape_cast %85 : vector<8x128xf32> to vector<1x8x128xf32>
    tpu.vector_store %arg7[%86, %c0_32, %c0_33], %89 {strides = array<i32>} : memref<8x8x128xf32, #tpu.memory_space<vmem>>, vector<1x8x128xf32>,
    %c2_i32 = arith.constant 2 : i32
    %90 = arith.index_cast %c2_i32 : i32 to index
    %c0_34 = arith.constant 0 : index
    %c0_35 = arith.constant 0 : index
    %91 = vector.load %arg2[%90, %c0_34, %c0_35] : memref<8x8x512xbf16, #tpu.memory_space<vmem>>, vector<1x8x512xbf16>
    %92 = vector.shape_cast %91 : vector<1x8x512xbf16> to vector<8x512xbf16>
    %93 = arith.extf %92 : vector<8x512xbf16> to vector<8x512xf32>
    %94 = arith.truncf %85 : vector<8x128xf32> to vector<8x128xbf16>
    %cst_36 = arith.constant dense<0.000000e+00> : vector<8x512xf32>
    %95 = tpu.matmul %94, %3, %cst_36 {dimension_numbers = #tpu.dot_dimension_numbers<[1], [0], [0], [1], [0, 0, 1, 1], [], []>} : vector<8x128xbf16>, vector<128x512xbf16>, vector<8x512xf32> -> vector<8x512xf32>
    %96 = arith.addf %93, %95 : vector<8x512xf32>
    %97 = vector.extract_strided_slice %96 {offsets = [0, 0], sizes = [8, 128], strides = [1, 1]} : vector<8x512xf32> to vector<8x128xf32>
    %cst_37 = arith.constant 5.000000e-01 : f32
    %98 = vector.broadcast %cst_37 : f32 to vector<8x128xf32>
    %99 = arith.mulf %98, %97 : vector<8x128xf32>
    %100 = math.tanh %99 : vector<8x128xf32>
    %cst_38 = arith.constant 5.000000e-01 : f32
    %101 = vector.broadcast %cst_38 : f32 to vector<8x128xf32>
    %102 = arith.mulf %101, %100 : vector<8x128xf32>
    %cst_39 = arith.constant 5.000000e-01 : f32
    %103 = vector.broadcast %cst_39 : f32 to vector<8x128xf32>
    %104 = arith.addf %102, %103 : vector<8x128xf32>
    %105 = vector.extract_strided_slice %96 {offsets = [0, 128], sizes = [8, 128], strides = [1, 1]} : vector<8x512xf32> to vector<8x128xf32>
    %cst_40 = arith.constant 5.000000e-01 : f32
    %106 = vector.broadcast %cst_40 : f32 to vector<8x128xf32>
    %107 = arith.mulf %106, %105 : vector<8x128xf32>
    %108 = math.tanh %107 : vector<8x128xf32>
    %cst_41 = arith.constant 5.000000e-01 : f32
    %109 = vector.broadcast %cst_41 : f32 to vector<8x128xf32>
    %110 = arith.mulf %109, %108 : vector<8x128xf32>
    %cst_42 = arith.constant 5.000000e-01 : f32
    %111 = vector.broadcast %cst_42 : f32 to vector<8x128xf32>
    %112 = arith.addf %110, %111 : vector<8x128xf32>
    %113 = vector.extract_strided_slice %96 {offsets = [0, 256], sizes = [8, 128], strides = [1, 1]} : vector<8x512xf32> to vector<8x128xf32>
    %114 = math.tanh %113 : vector<8x128xf32>
    %115 = vector.extract_strided_slice %96 {offsets = [0, 384], sizes = [8, 128], strides = [1, 1]} : vector<8x512xf32> to vector<8x128xf32>
    %cst_43 = arith.constant 5.000000e-01 : f32
    %116 = vector.broadcast %cst_43 : f32 to vector<8x128xf32>
    %117 = arith.mulf %116, %115 : vector<8x128xf32>
    %118 = math.tanh %117 : vector<8x128xf32>
    %cst_44 = arith.constant 5.000000e-01 : f32
    %119 = vector.broadcast %cst_44 : f32 to vector<8x128xf32>
    %120 = arith.mulf %119, %118 : vector<8x128xf32>
    %cst_45 = arith.constant 5.000000e-01 : f32
    %121 = vector.broadcast %cst_45 : f32 to vector<8x128xf32>
    %122 = arith.addf %120, %121 : vector<8x128xf32>
    %123 = arith.mulf %112, %83 : vector<8x128xf32>
    %124 = arith.mulf %104, %114 : vector<8x128xf32>
    %125 = arith.addf %123, %124 : vector<8x128xf32>
    %126 = math.tanh %125 : vector<8x128xf32>
    %127 = arith.mulf %122, %126 : vector<8x128xf32>
    %128 = arith.index_cast %c2_i32 : i32 to index
    %c0_46 = arith.constant 0 : index
    %c0_47 = arith.constant 0 : index
    %129 = vector.load %arg7[%128, %c0_46, %c0_47] : memref<8x8x128xf32, #tpu.memory_space<vmem>>, vector<1x8x128xf32>
    %130 = vector.shape_cast %129 : vector<1x8x128xf32> to vector<8x128xf32>
    %131 = vector.shape_cast %127 : vector<8x128xf32> to vector<1x8x128xf32>
    tpu.vector_store %arg7[%128, %c0_46, %c0_47], %131 {strides = array<i32>} : memref<8x8x128xf32, #tpu.memory_space<vmem>>, vector<1x8x128xf32>,
    %c3_i32 = arith.constant 3 : i32
    %132 = arith.index_cast %c3_i32 : i32 to index
    %c0_48 = arith.constant 0 : index
    %c0_49 = arith.constant 0 : index
    %133 = vector.load %arg2[%132, %c0_48, %c0_49] : memref<8x8x512xbf16, #tpu.memory_space<vmem>>, vector<1x8x512xbf16>
    %134 = vector.shape_cast %133 : vector<1x8x512xbf16> to vector<8x512xbf16>
    %135 = arith.extf %134 : vector<8x512xbf16> to vector<8x512xf32>
    %136 = arith.truncf %127 : vector<8x128xf32> to vector<8x128xbf16>
    %cst_50 = arith.constant dense<0.000000e+00> : vector<8x512xf32>
    %137 = tpu.matmul %136, %3, %cst_50 {dimension_numbers = #tpu.dot_dimension_numbers<[1], [0], [0], [1], [0, 0, 1, 1], [], []>} : vector<8x128xbf16>, vector<128x512xbf16>, vector<8x512xf32> -> vector<8x512xf32>
    %138 = arith.addf %135, %137 : vector<8x512xf32>
    %139 = vector.extract_strided_slice %138 {offsets = [0, 0], sizes = [8, 128], strides = [1, 1]} : vector<8x512xf32> to vector<8x128xf32>
    %cst_51 = arith.constant 5.000000e-01 : f32
    %140 = vector.broadcast %cst_51 : f32 to vector<8x128xf32>
    %141 = arith.mulf %140, %139 : vector<8x128xf32>
    %142 = math.tanh %141 : vector<8x128xf32>
    %cst_52 = arith.constant 5.000000e-01 : f32
    %143 = vector.broadcast %cst_52 : f32 to vector<8x128xf32>
    %144 = arith.mulf %143, %142 : vector<8x128xf32>
    %cst_53 = arith.constant 5.000000e-01 : f32
    %145 = vector.broadcast %cst_53 : f32 to vector<8x128xf32>
    %146 = arith.addf %144, %145 : vector<8x128xf32>
    %147 = vector.extract_strided_slice %138 {offsets = [0, 128], sizes = [8, 128], strides = [1, 1]} : vector<8x512xf32> to vector<8x128xf32>
    %cst_54 = arith.constant 5.000000e-01 : f32
    %148 = vector.broadcast %cst_54 : f32 to vector<8x128xf32>
    %149 = arith.mulf %148, %147 : vector<8x128xf32>
    %150 = math.tanh %149 : vector<8x128xf32>
    %cst_55 = arith.constant 5.000000e-01 : f32
    %151 = vector.broadcast %cst_55 : f32 to vector<8x128xf32>
    %152 = arith.mulf %151, %150 : vector<8x128xf32>
    %cst_56 = arith.constant 5.000000e-01 : f32
    %153 = vector.broadcast %cst_56 : f32 to vector<8x128xf32>
    %154 = arith.addf %152, %153 : vector<8x128xf32>
    %155 = vector.extract_strided_slice %138 {offsets = [0, 256], sizes = [8, 128], strides = [1, 1]} : vector<8x512xf32> to vector<8x128xf32>
    %156 = math.tanh %155 : vector<8x128xf32>
    %157 = vector.extract_strided_slice %138 {offsets = [0, 384], sizes = [8, 128], strides = [1, 1]} : vector<8x512xf32> to vector<8x128xf32>
    %cst_57 = arith.constant 5.000000e-01 : f32
    %158 = vector.broadcast %cst_57 : f32 to vector<8x128xf32>
    %159 = arith.mulf %158, %157 : vector<8x128xf32>
    %160 = math.tanh %159 : vector<8x128xf32>
    %cst_58 = arith.constant 5.000000e-01 : f32
    %161 = vector.broadcast %cst_58 : f32 to vector<8x128xf32>
    %162 = arith.mulf %161, %160 : vector<8x128xf32>
    %cst_59 = arith.constant 5.000000e-01 : f32
    %163 = vector.broadcast %cst_59 : f32 to vector<8x128xf32>
    %164 = arith.addf %162, %163 : vector<8x128xf32>
    %165 = arith.mulf %154, %125 : vector<8x128xf32>
    %166 = arith.mulf %146, %156 : vector<8x128xf32>
    %167 = arith.addf %165, %166 : vector<8x128xf32>
    %168 = math.tanh %167 : vector<8x128xf32>
    %169 = arith.mulf %164, %168 : vector<8x128xf32>
    %170 = arith.index_cast %c3_i32 : i32 to index
    %c0_60 = arith.constant 0 : index
    %c0_61 = arith.constant 0 : index
    %171 = vector.load %arg7[%170, %c0_60, %c0_61] : memref<8x8x128xf32, #tpu.memory_space<vmem>>, vector<1x8x128xf32>
    %172 = vector.shape_cast %171 : vector<1x8x128xf32> to vector<8x128xf32>
    %173 = vector.shape_cast %169 : vector<8x128xf32> to vector<1x8x128xf32>
    tpu.vector_store %arg7[%170, %c0_60, %c0_61], %173 {strides = array<i32>} : memref<8x8x128xf32, #tpu.memory_space<vmem>>, vector<1x8x128xf32>,
    %c4_i32 = arith.constant 4 : i32
    %174 = arith.index_cast %c4_i32 : i32 to index
    %c0_62 = arith.constant 0 : index
    %c0_63 = arith.constant 0 : index
    %175 = vector.load %arg2[%174, %c0_62, %c0_63] : memref<8x8x512xbf16, #tpu.memory_space<vmem>>, vector<1x8x512xbf16>
    %176 = vector.shape_cast %175 : vector<1x8x512xbf16> to vector<8x512xbf16>
    %177 = arith.extf %176 : vector<8x512xbf16> to vector<8x512xf32>
    %178 = arith.truncf %169 : vector<8x128xf32> to vector<8x128xbf16>
    %cst_64 = arith.constant dense<0.000000e+00> : vector<8x512xf32>
    %179 = tpu.matmul %178, %3, %cst_64 {dimension_numbers = #tpu.dot_dimension_numbers<[1], [0], [0], [1], [0, 0, 1, 1], [], []>} : vector<8x128xbf16>, vector<128x512xbf16>, vector<8x512xf32> -> vector<8x512xf32>
    %180 = arith.addf %177, %179 : vector<8x512xf32>
    %181 = vector.extract_strided_slice %180 {offsets = [0, 0], sizes = [8, 128], strides = [1, 1]} : vector<8x512xf32> to vector<8x128xf32>
    %cst_65 = arith.constant 5.000000e-01 : f32
    %182 = vector.broadcast %cst_65 : f32 to vector<8x128xf32>
    %183 = arith.mulf %182, %181 : vector<8x128xf32>
    %184 = math.tanh %183 : vector<8x128xf32>
    %cst_66 = arith.constant 5.000000e-01 : f32
    %185 = vector.broadcast %cst_66 : f32 to vector<8x128xf32>
    %186 = arith.mulf %185, %184 : vector<8x128xf32>
    %cst_67 = arith.constant 5.000000e-01 : f32
    %187 = vector.broadcast %cst_67 : f32 to vector<8x128xf32>
    %188 = arith.addf %186, %187 : vector<8x128xf32>
    %189 = vector.extract_strided_slice %180 {offsets = [0, 128], sizes = [8, 128], strides = [1, 1]} : vector<8x512xf32> to vector<8x128xf32>
    %cst_68 = arith.constant 5.000000e-01 : f32
    %190 = vector.broadcast %cst_68 : f32 to vector<8x128xf32>
    %191 = arith.mulf %190, %189 : vector<8x128xf32>
    %192 = math.tanh %191 : vector<8x128xf32>
    %cst_69 = arith.constant 5.000000e-01 : f32
    %193 = vector.broadcast %cst_69 : f32 to vector<8x128xf32>
    %194 = arith.mulf %193, %192 : vector<8x128xf32>
    %cst_70 = arith.constant 5.000000e-01 : f32
    %195 = vector.broadcast %cst_70 : f32 to vector<8x128xf32>
    %196 = arith.addf %194, %195 : vector<8x128xf32>
    %197 = vector.extract_strided_slice %180 {offsets = [0, 256], sizes = [8, 128], strides = [1, 1]} : vector<8x512xf32> to vector<8x128xf32>
    %198 = math.tanh %197 : vector<8x128xf32>
    %199 = vector.extract_strided_slice %180 {offsets = [0, 384], sizes = [8, 128], strides = [1, 1]} : vector<8x512xf32> to vector<8x128xf32>
    %cst_71 = arith.constant 5.000000e-01 : f32
    %200 = vector.broadcast %cst_71 : f32 to vector<8x128xf32>
    %201 = arith.mulf %200, %199 : vector<8x128xf32>
    %202 = math.tanh %201 : vector<8x128xf32>
    %cst_72 = arith.constant 5.000000e-01 : f32
    %203 = vector.broadcast %cst_72 : f32 to vector<8x128xf32>
    %204 = arith.mulf %203, %202 : vector<8x128xf32>
    %cst_73 = arith.constant 5.000000e-01 : f32
    %205 = vector.broadcast %cst_73 : f32 to vector<8x128xf32>
    %206 = arith.addf %204, %205 : vector<8x128xf32>
    %207 = arith.mulf %196, %167 : vector<8x128xf32>
    %208 = arith.mulf %188, %198 : vector<8x128xf32>
    %209 = arith.addf %207, %208 : vector<8x128xf32>
    %210 = math.tanh %209 : vector<8x128xf32>
    %211 = arith.mulf %206, %210 : vector<8x128xf32>
    %212 = arith.index_cast %c4_i32 : i32 to index
    %c0_74 = arith.constant 0 : index
    %c0_75 = arith.constant 0 : index
    %213 = vector.load %arg7[%212, %c0_74, %c0_75] : memref<8x8x128xf32, #tpu.memory_space<vmem>>, vector<1x8x128xf32>
    %214 = vector.shape_cast %213 : vector<1x8x128xf32> to vector<8x128xf32>
    %215 = vector.shape_cast %211 : vector<8x128xf32> to vector<1x8x128xf32>
    tpu.vector_store %arg7[%212, %c0_74, %c0_75], %215 {strides = array<i32>} : memref<8x8x128xf32, #tpu.memory_space<vmem>>, vector<1x8x128xf32>,
    %c5_i32 = arith.constant 5 : i32
    %216 = arith.index_cast %c5_i32 : i32 to index
    %c0_76 = arith.constant 0 : index
    %c0_77 = arith.constant 0 : index
    %217 = vector.load %arg2[%216, %c0_76, %c0_77] : memref<8x8x512xbf16, #tpu.memory_space<vmem>>, vector<1x8x512xbf16>
    %218 = vector.shape_cast %217 : vector<1x8x512xbf16> to vector<8x512xbf16>
    %219 = arith.extf %218 : vector<8x512xbf16> to vector<8x512xf32>
    %220 = arith.truncf %211 : vector<8x128xf32> to vector<8x128xbf16>
    %cst_78 = arith.constant dense<0.000000e+00> : vector<8x512xf32>
    %221 = tpu.matmul %220, %3, %cst_78 {dimension_numbers = #tpu.dot_dimension_numbers<[1], [0], [0], [1], [0, 0, 1, 1], [], []>} : vector<8x128xbf16>, vector<128x512xbf16>, vector<8x512xf32> -> vector<8x512xf32>
    %222 = arith.addf %219, %221 : vector<8x512xf32>
    %223 = vector.extract_strided_slice %222 {offsets = [0, 0], sizes = [8, 128], strides = [1, 1]} : vector<8x512xf32> to vector<8x128xf32>
    %cst_79 = arith.constant 5.000000e-01 : f32
    %224 = vector.broadcast %cst_79 : f32 to vector<8x128xf32>
    %225 = arith.mulf %224, %223 : vector<8x128xf32>
    %226 = math.tanh %225 : vector<8x128xf32>
    %cst_80 = arith.constant 5.000000e-01 : f32
    %227 = vector.broadcast %cst_80 : f32 to vector<8x128xf32>
    %228 = arith.mulf %227, %226 : vector<8x128xf32>
    %cst_81 = arith.constant 5.000000e-01 : f32
    %229 = vector.broadcast %cst_81 : f32 to vector<8x128xf32>
    %230 = arith.addf %228, %229 : vector<8x128xf32>
    %231 = vector.extract_strided_slice %222 {offsets = [0, 128], sizes = [8, 128], strides = [1, 1]} : vector<8x512xf32> to vector<8x128xf32>
    %cst_82 = arith.constant 5.000000e-01 : f32
    %232 = vector.broadcast %cst_82 : f32 to vector<8x128xf32>
    %233 = arith.mulf %232, %231 : vector<8x128xf32>
    %234 = math.tanh %233 : vector<8x128xf32>
    %cst_83 = arith.constant 5.000000e-01 : f32
    %235 = vector.broadcast %cst_83 : f32 to vector<8x128xf32>
    %236 = arith.mulf %235, %234 : vector<8x128xf32>
    %cst_84 = arith.constant 5.000000e-01 : f32
    %237 = vector.broadcast %cst_84 : f32 to vector<8x128xf32>
    %238 = arith.addf %236, %237 : vector<8x128xf32>
    %239 = vector.extract_strided_slice %222 {offsets = [0, 256], sizes = [8, 128], strides = [1, 1]} : vector<8x512xf32> to vector<8x128xf32>
    %240 = math.tanh %239 : vector<8x128xf32>
    %241 = vector.extract_strided_slice %222 {offsets = [0, 384], sizes = [8, 128], strides = [1, 1]} : vector<8x512xf32> to vector<8x128xf32>
    %cst_85 = arith.constant 5.000000e-01 : f32
    %242 = vector.broadcast %cst_85 : f32 to vector<8x128xf32>
    %243 = arith.mulf %242, %241 : vector<8x128xf32>
    %244 = math.tanh %243 : vector<8x128xf32>
    %cst_86 = arith.constant 5.000000e-01 : f32
    %245 = vector.broadcast %cst_86 : f32 to vector<8x128xf32>
    %246 = arith.mulf %245, %244 : vector<8x128xf32>
    %cst_87 = arith.constant 5.000000e-01 : f32
    %247 = vector.broadcast %cst_87 : f32 to vector<8x128xf32>
    %248 = arith.addf %246, %247 : vector<8x128xf32>
    %249 = arith.mulf %238, %209 : vector<8x128xf32>
    %250 = arith.mulf %230, %240 : vector<8x128xf32>
    %251 = arith.addf %249, %250 : vector<8x128xf32>
    %252 = math.tanh %251 : vector<8x128xf32>
    %253 = arith.mulf %248, %252 : vector<8x128xf32>
    %254 = arith.index_cast %c5_i32 : i32 to index
    %c0_88 = arith.constant 0 : index
    %c0_89 = arith.constant 0 : index
    %255 = vector.load %arg7[%254, %c0_88, %c0_89] : memref<8x8x128xf32, #tpu.memory_space<vmem>>, vector<1x8x128xf32>
    %256 = vector.shape_cast %255 : vector<1x8x128xf32> to vector<8x128xf32>
    %257 = vector.shape_cast %253 : vector<8x128xf32> to vector<1x8x128xf32>
    tpu.vector_store %arg7[%254, %c0_88, %c0_89], %257 {strides = array<i32>} : memref<8x8x128xf32, #tpu.memory_space<vmem>>, vector<1x8x128xf32>,
    %c6_i32 = arith.constant 6 : i32
    %258 = arith.index_cast %c6_i32 : i32 to index
    %c0_90 = arith.constant 0 : index
    %c0_91 = arith.constant 0 : index
    %259 = vector.load %arg2[%258, %c0_90, %c0_91] : memref<8x8x512xbf16, #tpu.memory_space<vmem>>, vector<1x8x512xbf16>
    %260 = vector.shape_cast %259 : vector<1x8x512xbf16> to vector<8x512xbf16>
    %261 = arith.extf %260 : vector<8x512xbf16> to vector<8x512xf32>
    %262 = arith.truncf %253 : vector<8x128xf32> to vector<8x128xbf16>
    %cst_92 = arith.constant dense<0.000000e+00> : vector<8x512xf32>
    %263 = tpu.matmul %262, %3, %cst_92 {dimension_numbers = #tpu.dot_dimension_numbers<[1], [0], [0], [1], [0, 0, 1, 1], [], []>} : vector<8x128xbf16>, vector<128x512xbf16>, vector<8x512xf32> -> vector<8x512xf32>
    %264 = arith.addf %261, %263 : vector<8x512xf32>
    %265 = vector.extract_strided_slice %264 {offsets = [0, 0], sizes = [8, 128], strides = [1, 1]} : vector<8x512xf32> to vector<8x128xf32>
    %cst_93 = arith.constant 5.000000e-01 : f32
    %266 = vector.broadcast %cst_93 : f32 to vector<8x128xf32>
    %267 = arith.mulf %266, %265 : vector<8x128xf32>
    %268 = math.tanh %267 : vector<8x128xf32>
    %cst_94 = arith.constant 5.000000e-01 : f32
    %269 = vector.broadcast %cst_94 : f32 to vector<8x128xf32>
    %270 = arith.mulf %269, %268 : vector<8x128xf32>
    %cst_95 = arith.constant 5.000000e-01 : f32
    %271 = vector.broadcast %cst_95 : f32 to vector<8x128xf32>
    %272 = arith.addf %270, %271 : vector<8x128xf32>
    %273 = vector.extract_strided_slice %264 {offsets = [0, 128], sizes = [8, 128], strides = [1, 1]} : vector<8x512xf32> to vector<8x128xf32>
    %cst_96 = arith.constant 5.000000e-01 : f32
    %274 = vector.broadcast %cst_96 : f32 to vector<8x128xf32>
    %275 = arith.mulf %274, %273 : vector<8x128xf32>
    %276 = math.tanh %275 : vector<8x128xf32>
    %cst_97 = arith.constant 5.000000e-01 : f32
    %277 = vector.broadcast %cst_97 : f32 to vector<8x128xf32>
    %278 = arith.mulf %277, %276 : vector<8x128xf32>
    %cst_98 = arith.constant 5.000000e-01 : f32
    %279 = vector.broadcast %cst_98 : f32 to vector<8x128xf32>
    %280 = arith.addf %278, %279 : vector<8x128xf32>
    %281 = vector.extract_strided_slice %264 {offsets = [0, 256], sizes = [8, 128], strides = [1, 1]} : vector<8x512xf32> to vector<8x128xf32>
    %282 = math.tanh %281 : vector<8x128xf32>
    %283 = vector.extract_strided_slice %264 {offsets = [0, 384], sizes = [8, 128], strides = [1, 1]} : vector<8x512xf32> to vector<8x128xf32>
    %cst_99 = arith.constant 5.000000e-01 : f32
    %284 = vector.broadcast %cst_99 : f32 to vector<8x128xf32>
    %285 = arith.mulf %284, %283 : vector<8x128xf32>
    %286 = math.tanh %285 : vector<8x128xf32>
    %cst_100 = arith.constant 5.000000e-01 : f32
    %287 = vector.broadcast %cst_100 : f32 to vector<8x128xf32>
    %288 = arith.mulf %287, %286 : vector<8x128xf32>
    %cst_101 = arith.constant 5.000000e-01 : f32
    %289 = vector.broadcast %cst_101 : f32 to vector<8x128xf32>
    %290 = arith.addf %288, %289 : vector<8x128xf32>
    %291 = arith.mulf %280, %251 : vector<8x128xf32>
    %292 = arith.mulf %272, %282 : vector<8x128xf32>
    %293 = arith.addf %291, %292 : vector<8x128xf32>
    %294 = math.tanh %293 : vector<8x128xf32>
    %295 = arith.mulf %290, %294 : vector<8x128xf32>
    %296 = arith.index_cast %c6_i32 : i32 to index
    %c0_102 = arith.constant 0 : index
    %c0_103 = arith.constant 0 : index
    %297 = vector.load %arg7[%296, %c0_102, %c0_103] : memref<8x8x128xf32, #tpu.memory_space<vmem>>, vector<1x8x128xf32>
    %298 = vector.shape_cast %297 : vector<1x8x128xf32> to vector<8x128xf32>
    %299 = vector.shape_cast %295 : vector<8x128xf32> to vector<1x8x128xf32>
    tpu.vector_store %arg7[%296, %c0_102, %c0_103], %299 {strides = array<i32>} : memref<8x8x128xf32, #tpu.memory_space<vmem>>, vector<1x8x128xf32>,
    %c7_i32 = arith.constant 7 : i32
    %300 = arith.index_cast %c7_i32 : i32 to index
    %c0_104 = arith.constant 0 : index
    %c0_105 = arith.constant 0 : index
    %301 = vector.load %arg2[%300, %c0_104, %c0_105] : memref<8x8x512xbf16, #tpu.memory_space<vmem>>, vector<1x8x512xbf16>
    %302 = vector.shape_cast %301 : vector<1x8x512xbf16> to vector<8x512xbf16>
    %303 = arith.extf %302 : vector<8x512xbf16> to vector<8x512xf32>
    %304 = arith.truncf %295 : vector<8x128xf32> to vector<8x128xbf16>
    %cst_106 = arith.constant dense<0.000000e+00> : vector<8x512xf32>
    %305 = tpu.matmul %304, %3, %cst_106 {dimension_numbers = #tpu.dot_dimension_numbers<[1], [0], [0], [1], [0, 0, 1, 1], [], []>} : vector<8x128xbf16>, vector<128x512xbf16>, vector<8x512xf32> -> vector<8x512xf32>
    %306 = arith.addf %303, %305 : vector<8x512xf32>
    %307 = vector.extract_strided_slice %306 {offsets = [0, 0], sizes = [8, 128], strides = [1, 1]} : vector<8x512xf32> to vector<8x128xf32>
    %cst_107 = arith.constant 5.000000e-01 : f32
    %308 = vector.broadcast %cst_107 : f32 to vector<8x128xf32>
    %309 = arith.mulf %308, %307 : vector<8x128xf32>
    %310 = math.tanh %309 : vector<8x128xf32>
    %cst_108 = arith.constant 5.000000e-01 : f32
    %311 = vector.broadcast %cst_108 : f32 to vector<8x128xf32>
    %312 = arith.mulf %311, %310 : vector<8x128xf32>
    %cst_109 = arith.constant 5.000000e-01 : f32
    %313 = vector.broadcast %cst_109 : f32 to vector<8x128xf32>
    %314 = arith.addf %312, %313 : vector<8x128xf32>
    %315 = vector.extract_strided_slice %306 {offsets = [0, 128], sizes = [8, 128], strides = [1, 1]} : vector<8x512xf32> to vector<8x128xf32>
    %cst_110 = arith.constant 5.000000e-01 : f32
    %316 = vector.broadcast %cst_110 : f32 to vector<8x128xf32>
    %317 = arith.mulf %316, %315 : vector<8x128xf32>
    %318 = math.tanh %317 : vector<8x128xf32>
    %cst_111 = arith.constant 5.000000e-01 : f32
    %319 = vector.broadcast %cst_111 : f32 to vector<8x128xf32>
    %320 = arith.mulf %319, %318 : vector<8x128xf32>
    %cst_112 = arith.constant 5.000000e-01 : f32
    %321 = vector.broadcast %cst_112 : f32 to vector<8x128xf32>
    %322 = arith.addf %320, %321 : vector<8x128xf32>
    %323 = vector.extract_strided_slice %306 {offsets = [0, 256], sizes = [8, 128], strides = [1, 1]} : vector<8x512xf32> to vector<8x128xf32>
    %324 = math.tanh %323 : vector<8x128xf32>
    %325 = vector.extract_strided_slice %306 {offsets = [0, 384], sizes = [8, 128], strides = [1, 1]} : vector<8x512xf32> to vector<8x128xf32>
    %cst_113 = arith.constant 5.000000e-01 : f32
    %326 = vector.broadcast %cst_113 : f32 to vector<8x128xf32>
    %327 = arith.mulf %326, %325 : vector<8x128xf32>
    %328 = math.tanh %327 : vector<8x128xf32>
    %cst_114 = arith.constant 5.000000e-01 : f32
    %329 = vector.broadcast %cst_114 : f32 to vector<8x128xf32>
    %330 = arith.mulf %329, %328 : vector<8x128xf32>
    %cst_115 = arith.constant 5.000000e-01 : f32
    %331 = vector.broadcast %cst_115 : f32 to vector<8x128xf32>
    %332 = arith.addf %330, %331 : vector<8x128xf32>
    %333 = arith.mulf %322, %293 : vector<8x128xf32>
    %334 = arith.mulf %314, %324 : vector<8x128xf32>
    %335 = arith.addf %333, %334 : vector<8x128xf32>
    %336 = math.tanh %335 : vector<8x128xf32>
    %337 = arith.mulf %332, %336 : vector<8x128xf32>
    %338 = arith.index_cast %c7_i32 : i32 to index
    %c0_116 = arith.constant 0 : index
    %c0_117 = arith.constant 0 : index
    %339 = vector.load %arg7[%338, %c0_116, %c0_117] : memref<8x8x128xf32, #tpu.memory_space<vmem>>, vector<1x8x128xf32>
    %340 = vector.shape_cast %339 : vector<1x8x128xf32> to vector<8x128xf32>
    %341 = vector.shape_cast %337 : vector<8x128xf32> to vector<1x8x128xf32>
    tpu.vector_store %arg7[%338, %c0_116, %c0_117], %341 {strides = array<i32>} : memref<8x8x128xf32, #tpu.memory_space<vmem>>, vector<1x8x128xf32>,
    %c8_i32 = arith.constant 8 : i32
    %c0_118 = arith.constant 0 : index
    %c0_119 = arith.constant 0 : index
    %342 = vector.load %arg5[%c0_118, %c0_119] : memref<8x128xf32, #tpu.memory_space<vmem>>, vector<8x128xf32>
    tpu.vector_store %arg5[%c0_118, %c0_119], %337 {strides = array<i32>} : memref<8x128xf32, #tpu.memory_space<vmem>>, vector<8x128xf32>,
    %c0_120 = arith.constant 0 : index
    %c0_121 = arith.constant 0 : index
    %343 = vector.load %arg6[%c0_120, %c0_121] : memref<8x128xf32, #tpu.memory_space<vmem>>, vector<8x128xf32>
    tpu.vector_store %arg6[%c0_120, %c0_121], %335 {strides = array<i32>} : memref<8x128xf32, #tpu.memory_space<vmem>>, vector<8x128xf32>,
    %c0_122 = arith.constant 0 : index
    %c0_123 = arith.constant 0 : index
    %c0_124 = arith.constant 0 : index
    %344 = vector.load %arg7[%c0_122, %c0_123, %c0_124] : memref<8x8x128xf32, #tpu.memory_space<vmem>>, vector<8x1x128xf32>
    %345 = vector.shape_cast %344 : vector<8x1x128xf32> to vector<8x128xf32>
    %c0_125 = arith.constant 0 : index
    %c0_126 = arith.constant 0 : index
    %c0_127 = arith.constant 0 : index
    %346 = vector.load %arg4[%c0_125, %c0_126, %c0_127] : memref<8x8x128xf32, #tpu.memory_space<vmem>>, vector<1x8x128xf32>
    %347 = vector.shape_cast %346 : vector<1x8x128xf32> to vector<8x128xf32>
    %348 = vector.shape_cast %345 : vector<8x128xf32> to vector<1x8x128xf32>
    tpu.vector_store %arg4[%c0_125, %c0_126, %c0_127], %348 {strides = array<i32>} : memref<8x8x128xf32, #tpu.memory_space<vmem>>, vector<1x8x128xf32>,
    %c0_128 = arith.constant 0 : index
    %c1 = arith.constant 1 : index
    %c0_129 = arith.constant 0 : index
    %349 = vector.load %arg7[%c0_128, %c1, %c0_129] : memref<8x8x128xf32, #tpu.memory_space<vmem>>, vector<8x1x128xf32>
    %350 = vector.shape_cast %349 : vector<8x1x128xf32> to vector<8x128xf32>
    %c1_130 = arith.constant 1 : index
    %c0_131 = arith.constant 0 : index
    %c0_132 = arith.constant 0 : index
    %351 = vector.load %arg4[%c1_130, %c0_131, %c0_132] : memref<8x8x128xf32, #tpu.memory_space<vmem>>, vector<1x8x128xf32>
    %352 = vector.shape_cast %351 : vector<1x8x128xf32> to vector<8x128xf32>
    %353 = vector.shape_cast %350 : vector<8x128xf32> to vector<1x8x128xf32>
    tpu.vector_store %arg4[%c1_130, %c0_131, %c0_132], %353 {strides = array<i32>} : memref<8x8x128xf32, #tpu.memory_space<vmem>>, vector<1x8x128xf32>,
    %c0_133 = arith.constant 0 : index
    %c2 = arith.constant 2 : index
    %c0_134 = arith.constant 0 : index
    %354 = vector.load %arg7[%c0_133, %c2, %c0_134] : memref<8x8x128xf32, #tpu.memory_space<vmem>>, vector<8x1x128xf32>
    %355 = vector.shape_cast %354 : vector<8x1x128xf32> to vector<8x128xf32>
    %c2_135 = arith.constant 2 : index
    %c0_136 = arith.constant 0 : index
    %c0_137 = arith.constant 0 : index
    %356 = vector.load %arg4[%c2_135, %c0_136, %c0_137] : memref<8x8x128xf32, #tpu.memory_space<vmem>>, vector<1x8x128xf32>
    %357 = vector.shape_cast %356 : vector<1x8x128xf32> to vector<8x128xf32>
    %358 = vector.shape_cast %355 : vector<8x128xf32> to vector<1x8x128xf32>
    tpu.vector_store %arg4[%c2_135, %c0_136, %c0_137], %358 {strides = array<i32>} : memref<8x8x128xf32, #tpu.memory_space<vmem>>, vector<1x8x128xf32>,
    %c0_138 = arith.constant 0 : index
    %c3 = arith.constant 3 : index
    %c0_139 = arith.constant 0 : index
    %359 = vector.load %arg7[%c0_138, %c3, %c0_139] : memref<8x8x128xf32, #tpu.memory_space<vmem>>, vector<8x1x128xf32>
    %360 = vector.shape_cast %359 : vector<8x1x128xf32> to vector<8x128xf32>
    %c3_140 = arith.constant 3 : index
    %c0_141 = arith.constant 0 : index
    %c0_142 = arith.constant 0 : index
    %361 = vector.load %arg4[%c3_140, %c0_141, %c0_142] : memref<8x8x128xf32, #tpu.memory_space<vmem>>, vector<1x8x128xf32>
    %362 = vector.shape_cast %361 : vector<1x8x128xf32> to vector<8x128xf32>
    %363 = vector.shape_cast %360 : vector<8x128xf32> to vector<1x8x128xf32>
    tpu.vector_store %arg4[%c3_140, %c0_141, %c0_142], %363 {strides = array<i32>} : memref<8x8x128xf32, #tpu.memory_space<vmem>>, vector<1x8x128xf32>,
    %c0_143 = arith.constant 0 : index
    %c4 = arith.constant 4 : index
    %c0_144 = arith.constant 0 : index
    %364 = vector.load %arg7[%c0_143, %c4, %c0_144] : memref<8x8x128xf32, #tpu.memory_space<vmem>>, vector<8x1x128xf32>
    %365 = vector.shape_cast %364 : vector<8x1x128xf32> to vector<8x128xf32>
    %c4_145 = arith.constant 4 : index
    %c0_146 = arith.constant 0 : index
    %c0_147 = arith.constant 0 : index
    %366 = vector.load %arg4[%c4_145, %c0_146, %c0_147] : memref<8x8x128xf32, #tpu.memory_space<vmem>>, vector<1x8x128xf32>
    %367 = vector.shape_cast %366 : vector<1x8x128xf32> to vector<8x128xf32>
    %368 = vector.shape_cast %365 : vector<8x128xf32> to vector<1x8x128xf32>
    tpu.vector_store %arg4[%c4_145, %c0_146, %c0_147], %368 {strides = array<i32>} : memref<8x8x128xf32, #tpu.memory_space<vmem>>, vector<1x8x128xf32>,
    %c0_148 = arith.constant 0 : index
    %c5 = arith.constant 5 : index
    %c0_149 = arith.constant 0 : index
    %369 = vector.load %arg7[%c0_148, %c5, %c0_149] : memref<8x8x128xf32, #tpu.memory_space<vmem>>, vector<8x1x128xf32>
    %370 = vector.shape_cast %369 : vector<8x1x128xf32> to vector<8x128xf32>
    %c5_150 = arith.constant 5 : index
    %c0_151 = arith.constant 0 : index
    %c0_152 = arith.constant 0 : index
    %371 = vector.load %arg4[%c5_150, %c0_151, %c0_152] : memref<8x8x128xf32, #tpu.memory_space<vmem>>, vector<1x8x128xf32>
    %372 = vector.shape_cast %371 : vector<1x8x128xf32> to vector<8x128xf32>
    %373 = vector.shape_cast %370 : vector<8x128xf32> to vector<1x8x128xf32>
    tpu.vector_store %arg4[%c5_150, %c0_151, %c0_152], %373 {strides = array<i32>} : memref<8x8x128xf32, #tpu.memory_space<vmem>>, vector<1x8x128xf32>,
    %c0_153 = arith.constant 0 : index
    %c6 = arith.constant 6 : index
    %c0_154 = arith.constant 0 : index
    %374 = vector.load %arg7[%c0_153, %c6, %c0_154] : memref<8x8x128xf32, #tpu.memory_space<vmem>>, vector<8x1x128xf32>
    %375 = vector.shape_cast %374 : vector<8x1x128xf32> to vector<8x128xf32>
    %c6_155 = arith.constant 6 : index
    %c0_156 = arith.constant 0 : index
    %c0_157 = arith.constant 0 : index
    %376 = vector.load %arg4[%c6_155, %c0_156, %c0_157] : memref<8x8x128xf32, #tpu.memory_space<vmem>>, vector<1x8x128xf32>
    %377 = vector.shape_cast %376 : vector<1x8x128xf32> to vector<8x128xf32>
    %378 = vector.shape_cast %375 : vector<8x128xf32> to vector<1x8x128xf32>
    tpu.vector_store %arg4[%c6_155, %c0_156, %c0_157], %378 {strides = array<i32>} : memref<8x8x128xf32, #tpu.memory_space<vmem>>, vector<1x8x128xf32>,
    %c0_158 = arith.constant 0 : index
    %c7 = arith.constant 7 : index
    %c0_159 = arith.constant 0 : index
    %379 = vector.load %arg7[%c0_158, %c7, %c0_159] : memref<8x8x128xf32, #tpu.memory_space<vmem>>, vector<8x1x128xf32>
    %380 = vector.shape_cast %379 : vector<8x1x128xf32> to vector<8x128xf32>
    %c7_160 = arith.constant 7 : index
    %c0_161 = arith.constant 0 : index
    %c0_162 = arith.constant 0 : index
    %381 = vector.load %arg4[%c7_160, %c0_161, %c0_162] : memref<8x8x128xf32, #tpu.memory_space<vmem>>, vector<1x8x128xf32>
    %382 = vector.shape_cast %381 : vector<1x8x128xf32> to vector<8x128xf32>
    %383 = vector.shape_cast %380 : vector<8x128xf32> to vector<1x8x128xf32>
    tpu.vector_store %arg4[%c7_160, %c0_161, %c0_162], %383 {strides = array<i32>} : memref<8x8x128xf32, #tpu.memory_space<vmem>>, vector<1x8x128xf32>,
    return
  }
  func.func @transform_0(%arg0: i32, %arg1: i32) -> (i32, i32, i32) {
    %c0_i32 = arith.constant 0 : i32
    %c0_i32_0 = arith.constant 0 : i32
    return %arg1, %arg0, %c0_i32 : i32, i32, i32
  }
  func.func @transform_1(%arg0: i32, %arg1: i32) -> (i32, i32) {
    %c0_i32 = arith.constant 0 : i32
    %c0_i32_0 = arith.constant 0 : i32
    %c0_i32_1 = arith.constant 0 : i32
    return %c0_i32, %c0_i32_0 : i32, i32
  }
  func.func @transform_2(%arg0: i32, %arg1: i32) -> (i32, i32, i32) {
    %c0_i32 = arith.constant 0 : i32
    %c0_i32_0 = arith.constant 0 : i32
    return %arg0, %arg1, %c0_i32 : i32, i32, i32
  }
}

</mosaic_0001>

<llo_original>
// kernel: vanilla_lstm_forward.1
$region0: #{vanilla_lstm_forward.1}
  #allocation0 [shape = 'u32[]', space=smem, size = 0x4, offset = 0x4, fixed_abs, tag = 'smem constant byte address 0x4 - core index']
  #allocation1 [shape = 'u32[144,128]{1,0:T(1,128)}', space=vmem, size = 0x12000, scoped, tag = 'internal scratch']
  #allocation2 [shape = 'f32[8,128]{1,0:T(8,128)}', space=vmem, size = 0x1000, scoped, tag = 'scratch operand']
  #allocation3 [shape = 'f32[8,128]{1,0:T(8,128)}', space=vmem, size = 0x1000, scoped, tag = 'scratch operand']
  #allocation4 [shape = 'f32[8,8,128]{2,1,0:T(8,128)}', space=vmem, size = 0x8000, scoped, tag = 'scratch operand']
  %s0 = inlined_call_operand.vmem [shape: bf16[8,8,512], index: 0, kind: input, shape index: {}]
  %s1 = inlined_call_operand.vmem [shape: bf16[128,512], index: 1, kind: input, shape index: {}]
  %s2 = inlined_call_operand.vmem [shape: f32[8,8,128], index: 2, kind: output, shape index: {}]
  %s3 = sld [smem:[#allocation0]]
  $region22: #{vanilla_lstm_forward.1} parent=0
    _
  %s5 = ssub.s32 1, %s3
  %s6 = scalar_select 0, %s5, %s3
  // Predicated region
  $region2: #{vanilla_lstm_forward.1} parent=0 // pred_check
    _
  $region3: #{vanilla_lstm_forward.1} parent=0 // pred_check_branch
    %8 = sbr.rel (0) target = $region5
  $region4: #{vanilla_lstm_forward.1} parent=0 // pred_region
    _
  $region5: #{vanilla_lstm_forward.1} parent=0 // pred_fallthru
    _
  // Predicated region
  $region6: #{vanilla_lstm_forward.1} parent=0 // pred_check
    _
  $region7: #{vanilla_lstm_forward.1} parent=0 // pred_check_branch
    %10 = sbr.rel (0) target = $region9
  $region8: #{vanilla_lstm_forward.1} parent=0 // pred_region
    _
  $region9: #{vanilla_lstm_forward.1} parent=0 // pred_fallthru
    _
  %p12 = scmp.eq.s32.totalorder 0, 0
  // Predicated region
  $region10: #{vanilla_lstm_forward.1} parent=0 // pred_check
    %p13 = pneg %p12
  $region11: #{vanilla_lstm_forward.1} parent=0 // pred_check_branch
    %15 = sbr.rel (%p13) target = $region13
  $region12: #{vanilla_lstm_forward.1} parent=0 // pred_region
    %16 = vst [vmem:[#allocation2] sm:$0xff] 0.0
    %17 = vst [vmem:[#allocation3] sm:$0xff] 0.0
  $region13: #{vanilla_lstm_forward.1} parent=0 // pred_fallthru
    _
  %v18 = vld [vmem:[%s1] sm:$0xff]
  %v19 = vld [vmem:[%s1 + $0x8] sm:$0xff]
  %v20 = vld [vmem:[%s1 + $0x10] sm:$0xff]
  %v21 = vld [vmem:[%s1 + $0x18] sm:$0xff]
  %v22 = vld [vmem:[%s1 + $0x20] sm:$0xff]
  %v23 = vld [vmem:[%s1 + $0x28] sm:$0xff]
  %v24 = vld [vmem:[%s1 + $0x30] sm:$0xff]
  %v25 = vld [vmem:[%s1 + $0x38] sm:$0xff]
  %v26 = vld [vmem:[%s1 + $0x40] sm:$0xff]
  %v27 = vld [vmem:[%s1 + $0x48] sm:$0xff]
  %v28 = vld [vmem:[%s1 + $0x50] sm:$0xff]
  %v29 = vld [vmem:[%s1 + $0x58] sm:$0xff]
  %v30 = vld [vmem:[%s1 + $0x60] sm:$0xff]
  %v31 = vld [vmem:[%s1 + $0x68] sm:$0xff]
  %v32 = vld [vmem:[%s1 + $0x70] sm:$0xff]
  %v33 = vld [vmem:[%s1 + $0x78] sm:$0xff]
  %v34 = vld [vmem:[%s1 + $0x80] sm:$0xff]
  %v35 = vld [vmem:[%s1 + $0x88] sm:$0xff]
  %v36 = vld [vmem:[%s1 + $0x90] sm:$0xff]
  %v37 = vld [vmem:[%s1 + $0x98] sm:$0xff]
  %v38 = vld [vmem:[%s1 + $0xa0] sm:$0xff]
  %v39 = vld [vmem:[%s1 + $0xa8] sm:$0xff]
  %v40 = vld [vmem:[%s1 + $0xb0] sm:$0xff]
  %v41 = vld [vmem:[%s1 + $0xb8] sm:$0xff]
  %v42 = vld [vmem:[%s1 + $0xc0] sm:$0xff]
  %v43 = vld [vmem:[%s1 + $0xc8] sm:$0xff]
  %v44 = vld [vmem:[%s1 + $0xd0] sm:$0xff]
  %v45 = vld [vmem:[%s1 + $0xd8] sm:$0xff]
  %v46 = vld [vmem:[%s1 + $0xe0] sm:$0xff]
  %v47 = vld [vmem:[%s1 + $0xe8] sm:$0xff]
  %v48 = vld [vmem:[%s1 + $0xf0] sm:$0xff]
  %v49 = vld [vmem:[%s1 + $0xf8] sm:$0xff]
  %v50 = vld [vmem:[#allocation2] sm:$0xff]
  %v51 = vld [vmem:[#allocation3] sm:$0xff]
  %v52 = vld [vmem:[%s0] sm:$0xff]
  %v53 = vld [vmem:[%s0 + $0x8] sm:$0xff]
  %v54 = vunpack.c.l.bf16 %v52
  %v55 = vunpack.c.h.bf16 %v52
  %v56 = vunpack.c.l.bf16 %v53
  %v57 = vunpack.c.h.bf16 %v53
  %v58 = vpack.c.bf16 %v50, %v50
  %v91 = vunpack.c.l.b16 %v18
  %v92 = vunpack.c.h.b16 %v18
  %v93 = vunpack.c.l.b16 %v19
  %v94 = vunpack.c.h.b16 %v19
  %v95 = vunpack.c.l.b16 %v20
  %v96 = vunpack.c.h.b16 %v20
  %v97 = vunpack.c.l.b16 %v21
  %v98 = vunpack.c.h.b16 %v21
  %v99 = vunpack.c.l.b16 %v22
  %v100 = vunpack.c.h.b16 %v22
  %v101 = vunpack.c.l.b16 %v23
  %v102 = vunpack.c.h.b16 %v23
  %v103 = vunpack.c.l.b16 %v24
  %v104 = vunpack.c.h.b16 %v24
  %v105 = vunpack.c.l.b16 %v25
  %v106 = vunpack.c.h.b16 %v25
  %v107 = vunpack.c.l.b16 %v26
  %v108 = vunpack.c.h.b16 %v26
  %v109 = vunpack.c.l.b16 %v27
  %v110 = vunpack.c.h.b16 %v27
  %v111 = vunpack.c.l.b16 %v28
  %v112 = vunpack.c.h.b16 %v28
  %v113 = vunpack.c.l.b16 %v29
  %v114 = vunpack.c.h.b16 %v29
  %v115 = vunpack.c.l.b16 %v30
  %v116 = vunpack.c.h.b16 %v30
  %v117 = vunpack.c.l.b16 %v31
  %v118 = vunpack.c.h.b16 %v31
  %v119 = vunpack.c.l.b16 %v32
  %v120 = vunpack.c.h.b16 %v32
  %v121 = vunpack.c.l.b16 %v33
  %v122 = vunpack.c.h.b16 %v33
  %v123 = vunpack.c.l.b16 %v34
  %v124 = vunpack.c.h.b16 %v34
  %v125 = vunpack.c.l.b16 %v35
  %v126 = vunpack.c.h.b16 %v35
  %v127 = vunpack.c.l.b16 %v36
  %v128 = vunpack.c.h.b16 %v36
  %v129 = vunpack.c.l.b16 %v37
  %v130 = vunpack.c.h.b16 %v37
  %v131 = vunpack.c.l.b16 %v38
  %v132 = vunpack.c.h.b16 %v38
  %v133 = vunpack.c.l.b16 %v39
  %v134 = vunpack.c.h.b16 %v39
  %v135 = vunpack.c.l.b16 %v40
  %v136 = vunpack.c.h.b16 %v40
  %v137 = vunpack.c.l.b16 %v41
  %v138 = vunpack.c.h.b16 %v41
  %v139 = vunpack.c.l.b16 %v42
  %v140 = vunpack.c.h.b16 %v42
  %v141 = vunpack.c.l.b16 %v43
  %v142 = vunpack.c.h.b16 %v43
  %v143 = vunpack.c.l.b16 %v44
  %v144 = vunpack.c.h.b16 %v44
  %v145 = vunpack.c.l.b16 %v45
  %v146 = vunpack.c.h.b16 %v45
  %v147 = vunpack.c.l.b16 %v46
  %v148 = vunpack.c.h.b16 %v46
  %v149 = vunpack.c.l.b16 %v47
  %v150 = vunpack.c.h.b16 %v47
  %v151 = vunpack.c.l.b16 %v48
  %v152 = vunpack.c.h.b16 %v48
  %v153 = vunpack.c.l.b16 %v49
  %v154 = vunpack.c.h.b16 %v49
  %v155 = vpack.c.b16 %v95, %v91
  %v156 = vpack.c.b16 %v96, %v92
  %v157 = vpack.c.b16 %v97, %v93
  %v158 = vpack.c.b16 %v98, %v94
  %v159 = vpack.c.b16 %v103, %v99
  %v160 = vpack.c.b16 %v104, %v100
  %v161 = vpack.c.b16 %v105, %v101
  %v162 = vpack.c.b16 %v106, %v102
  %v163 = vpack.c.b16 %v111, %v107
  %v164 = vpack.c.b16 %v112, %v108
  %v165 = vpack.c.b16 %v113, %v109
  %v166 = vpack.c.b16 %v114, %v110
  %v167 = vpack.c.b16 %v119, %v115
  %v168 = vpack.c.b16 %v120, %v116
  %v169 = vpack.c.b16 %v121, %v117
  %v170 = vpack.c.b16 %v122, %v118
  %v171 = vpack.c.b16 %v127, %v123
  %v172 = vpack.c.b16 %v128, %v124
  %v173 = vpack.c.b16 %v129, %v125
  %v174 = vpack.c.b16 %v130, %v126
  %v175 = vpack.c.b16 %v135, %v131
  %v176 = vpack.c.b16 %v136, %v132
  %v177 = vpack.c.b16 %v137, %v133
  %v178 = vpack.c.b16 %v138, %v134
  %v179 = vpack.c.b16 %v143, %v139
  %v180 = vpack.c.b16 %v144, %v140
  %v181 = vpack.c.b16 %v145, %v141
  %v182 = vpack.c.b16 %v146, %v142
  %v183 = vpack.c.b16 %v151, %v147
  %v184 = vpack.c.b16 %v152, %v148
  %v185 = vpack.c.b16 %v153, %v149
  %v186 = vpack.c.b16 %v154, %v150
  %219 = vmatprep.subr.bf16.mxu0 %v156
  %220 = vmatpush1.bf16.msra.mxu0 %v155
  %221 = vmatprep.subr.bf16.mxu0 %v160
  %222 = vmatpush1.bf16.msra.mxu0 %v159
  %223 = vmatprep.subr.bf16.mxu0 %v164
  %224 = vmatpush1.bf16.msra.mxu0 %v163
  %225 = vmatprep.subr.bf16.mxu0 %v168
  %226 = vmatpush1.bf16.msra.mxu0 %v167
  %227 = vmatprep.subr.bf16.mxu0 %v172
  %228 = vmatpush1.bf16.msra.mxu0 %v171
  %229 = vmatprep.subr.bf16.mxu0 %v176
  %230 = vmatpush1.bf16.msra.mxu0 %v175
  %231 = vmatprep.subr.bf16.mxu0 %v180
  %232 = vmatpush1.bf16.msra.mxu0 %v179
  %233 = vmatprep.subr.bf16.mxu0 %v184
  %234 = vmatpush1.bf16.msra.mxu0 %v183
  %235 = vmatprep.subr.bf16.mxu0 0
  %236 = vmatpush1.bf16.msra.mxu0 0
  %237 = vmatprep.subr.bf16.mxu0 0
  %238 = vmatpush1.bf16.msra.mxu0 0
  %239 = vmatprep.subr.bf16.mxu0 0
  %240 = vmatpush1.bf16.msra.mxu0 0
  %241 = vmatprep.subr.bf16.mxu0 0
  %242 = vmatpush1.bf16.msra.mxu0 0
  %243 = vmatprep.subr.bf16.mxu0 0
  %244 = vmatpush1.bf16.msra.mxu0 0
  %245 = vmatprep.subr.bf16.mxu0 0
  %246 = vmatpush1.bf16.msra.mxu0 0
  %247 = vmatprep.subr.bf16.mxu0 0
  %248 = vmatpush1.bf16.msra.mxu0 0
  %249 = vmatprep.subr.bf16.mxu0 0
  %250 = vmatpush1.bf16.msra.mxu0 0
  %251 = vmatprep.mubr.bf16.mxu0 0
  %252 = vmatmul.mubr.bf16.gmra.mrb[0].mxu0 %v58
  %v253 = vpop.f32.mrb[0].mxu0
  %v254 = vadd.f32 0.0, %v253
  %v255 = vpop.f32.mrb[0].mxu0
  %v256 = vadd.f32 0.0, %v255
  %v257 = vpop.f32.mrb[0].mxu0
  %v258 = vpop.f32.mrb[0].mxu0
  %259 = vdwg.mxu0
  %260 = vmatprep.subr.bf16.mxu0 %v158
  %261 = vmatpush1.bf16.msra.mxu0 %v157
  %262 = vmatprep.subr.bf16.mxu0 %v162
  %263 = vmatpush1.bf16.msra.mxu0 %v161
  %264 = vmatprep.subr.bf16.mxu0 %v166
  %265 = vmatpush1.bf16.msra.mxu0 %v165
  %266 = vmatprep.subr.bf16.mxu0 %v170
  %267 = vmatpush1.bf16.msra.mxu0 %v169
  %268 = vmatprep.subr.bf16.mxu0 %v174
  %269 = vmatpush1.bf16.msra.mxu0 %v173
  %270 = vmatprep.subr.bf16.mxu0 %v178
  %271 = vmatpush1.bf16.msra.mxu0 %v177
  %272 = vmatprep.subr.bf16.mxu0 %v182
  %273 = vmatpush1.bf16.msra.mxu0 %v181
  %274 = vmatprep.subr.bf16.mxu0 %v186
  %275 = vmatpush1.bf16.msra.mxu0 %v185
  %276 = vmatprep.subr.bf16.mxu0 0
  %277 = vmatpush1.bf16.msra.mxu0 0
  %278 = vmatprep.subr.bf16.mxu0 0
  %279 = vmatpush1.bf16.msra.mxu0 0
  %280 = vmatprep.subr.bf16.mxu0 0
  %281 = vmatpush1.bf16.msra.mxu0 0
  %282 = vmatprep.subr.bf16.mxu0 0
  %283 = vmatpush1.bf16.msra.mxu0 0
  %284 = vmatprep.subr.bf16.mxu0 0
  %285 = vmatpush1.bf16.msra.mxu0 0
  %286 = vmatprep.subr.bf16.mxu0 0
  %287 = vmatpush1.bf16.msra.mxu0 0
  %288 = vmatprep.subr.bf16.mxu0 0
  %289 = vmatpush1.bf16.msra.mxu0 0
  %290 = vmatprep.subr.bf16.mxu0 0
  %291 = vmatpush1.bf16.msra.mxu0 0
  %292 = vmatprep.mubr.bf16.mxu0 0
  %293 = vmatmul.mubr.bf16.gmra.mrb[0].mxu0 %v58
  %v294 = vpop.f32.mrb[0].mxu0
  %v295 = vadd.f32 0.0, %v294
  %v296 = vpop.f32.mrb[0].mxu0
  %v297 = vadd.f32 0.0, %v296
  %v298 = vpop.f32.mrb[0].mxu0
  %v299 = vpop.f32.mrb[0].mxu0
  %300 = vdwg.mxu0
  %v301 = vadd.f32 %v54, %v254
  %v302 = vadd.f32 %v55, %v256
  %v303 = vadd.f32 %v56, %v295
  %v304 = vadd.f32 %v57, %v297
  %v305 = vmul.f32 %v301, 0.5
  %v306 = vtanh.pop %v305
  %v307 = vmul.f32 %v306, 0.5
  %v308 = vadd.f32 %v307, 0.5
  %v309 = vmul.f32 %v302, 0.5
  %v310 = vtanh.pop %v309
  %v311 = vmul.f32 %v310, 0.5
  %v312 = vadd.f32 %v311, 0.5
  %v313 = vtanh.pop %v303
  %v314 = vmul.f32 %v304, 0.5
  %v315 = vtanh.pop %v314
  %v316 = vmul.f32 %v315, 0.5
  %v317 = vadd.f32 %v316, 0.5
  %v318 = vmul.f32 %v312, %v51
  %v319 = vmul.f32 %v308, %v313
  %v320 = vadd.f32 %v318, %v319
  %v321 = vtanh.pop %v320
  %v322 = vmul.f32 %v317, %v321
  %323 = vst [vmem:[#allocation4] sm:$0xff] %v322
  %s324 = scalar_lea.vmem %s0, 16
  %v325 = vld [vmem:[%s324] sm:$0xff]
  %v326 = vld [vmem:[%s324 + $0x8] sm:$0xff]
  %v327 = vunpack.c.l.bf16 %v325
  %v328 = vunpack.c.h.bf16 %v325
  %v329 = vunpack.c.l.bf16 %v326
  %v330 = vunpack.c.h.bf16 %v326
  %v331 = vpack.c.bf16 %v322, %v322
  %332 = vmatprep.subr.bf16.mxu0 %v156
  %333 = vmatpush1.bf16.msra.mxu0 %v155
  %334 = vmatprep.subr.bf16.mxu0 %v160
  %335 = vmatpush1.bf16.msra.mxu0 %v159
  %336 = vmatprep.subr.bf16.mxu0 %v164
  %337 = vmatpush1.bf16.msra.mxu0 %v163
  %338 = vmatprep.subr.bf16.mxu0 %v168
  %339 = vmatpush1.bf16.msra.mxu0 %v167
  %340 = vmatprep.subr.bf16.mxu0 %v172
  %341 = vmatpush1.bf16.msra.mxu0 %v171
  %342 = vmatprep.subr.bf16.mxu0 %v176
  %343 = vmatpush1.bf16.msra.mxu0 %v175
  %344 = vmatprep.subr.bf16.mxu0 %v180
  %345 = vmatpush1.bf16.msra.mxu0 %v179
  %346 = vmatprep.subr.bf16.mxu0 %v184
  %347 = vmatpush1.bf16.msra.mxu0 %v183
  %348 = vmatprep.subr.bf16.mxu0 0
  %349 = vmatpush1.bf16.msra.mxu0 0
  %350 = vmatprep.subr.bf16.mxu0 0
  %351 = vmatpush1.bf16.msra.mxu0 0
  %352 = vmatprep.subr.bf16.mxu0 0
  %353 = vmatpush1.bf16.msra.mxu0 0
  %354 = vmatprep.subr.bf16.mxu0 0
  %355 = vmatpush1.bf16.msra.mxu0 0
  %356 = vmatprep.subr.bf16.mxu0 0
  %357 = vmatpush1.bf16.msra.mxu0 0
  %358 = vmatprep.subr.bf16.mxu0 0
  %359 = vmatpush1.bf16.msra.mxu0 0
  %360 = vmatprep.subr.bf16.mxu0 0
  %361 = vmatpush1.bf16.msra.mxu0 0
  %362 = vmatprep.subr.bf16.mxu0 0
  %363 = vmatpush1.bf16.msra.mxu0 0
  %364 = vmatprep.mubr.bf16.mxu0 0
  %365 = vmatmul.mubr.bf16.gmra.mrb[0].mxu0 %v331
  %v366 = vpop.f32.mrb[0].mxu0
  %v367 = vadd.f32 0.0, %v366
  %v368 = vpop.f32.mrb[0].mxu0
  %v369 = vadd.f32 0.0, %v368
  %v370 = vpop.f32.mrb[0].mxu0
  %v371 = vpop.f32.mrb[0].mxu0
  %372 = vdwg.mxu0
  %373 = vmatprep.subr.bf16.mxu0 %v158
  %374 = vmatpush1.bf16.msra.mxu0 %v157
  %375 = vmatprep.subr.bf16.mxu0 %v162
  %376 = vmatpush1.bf16.msra.mxu0 %v161
  %377 = vmatprep.subr.bf16.mxu0 %v166
  %378 = vmatpush1.bf16.msra.mxu0 %v165
  %379 = vmatprep.subr.bf16.mxu0 %v170
  %380 = vmatpush1.bf16.msra.mxu0 %v169
  %381 = vmatprep.subr.bf16.mxu0 %v174
  %382 = vmatpush1.bf16.msra.mxu0 %v173
  %383 = vmatprep.subr.bf16.mxu0 %v178
  %384 = vmatpush1.bf16.msra.mxu0 %v177
  %385 = vmatprep.subr.bf16.mxu0 %v182
  %386 = vmatpush1.bf16.msra.mxu0 %v181
  %387 = vmatprep.subr.bf16.mxu0 %v186
  %388 = vmatpush1.bf16.msra.mxu0 %v185
  %389 = vmatprep.subr.bf16.mxu0 0
  %390 = vmatpush1.bf16.msra.mxu0 0
  %391 = vmatprep.subr.bf16.mxu0 0
  %392 = vmatpush1.bf16.msra.mxu0 0
  %393 = vmatprep.subr.bf16.mxu0 0
  %394 = vmatpush1.bf16.msra.mxu0 0
  %395 = vmatprep.subr.bf16.mxu0 0
  %396 = vmatpush1.bf16.msra.mxu0 0
  %397 = vmatprep.subr.bf16.mxu0 0
  %398 = vmatpush1.bf16.msra.mxu0 0
  %399 = vmatprep.subr.bf16.mxu0 0
  %400 = vmatpush1.bf16.msra.mxu0 0
  %401 = vmatprep.subr.bf16.mxu0 0
  %402 = vmatpush1.bf16.msra.mxu0 0
  %403 = vmatprep.subr.bf16.mxu0 0
  %404 = vmatpush1.bf16.msra.mxu0 0
  %405 = vmatprep.mubr.bf16.mxu0 0
  %406 = vmatmul.mubr.bf16.gmra.mrb[0].mxu0 %v331
  %v407 = vpop.f32.mrb[0].mxu0
  %v408 = vadd.f32 0.0, %v407
  %v409 = vpop.f32.mrb[0].mxu0
  %v410 = vadd.f32 0.0, %v409
  %v411 = vpop.f32.mrb[0].mxu0
  %v412 = vpop.f32.mrb[0].mxu0
  %413 = vdwg.mxu0
  %v414 = vadd.f32 %v327, %v367
  %v415 = vadd.f32 %v328, %v369
  %v416 = vadd.f32 %v329, %v408
  %v417 = vadd.f32 %v330, %v410
  %v418 = vmul.f32 %v414, 0.5
  %v419 = vtanh.pop %v418
  %v420 = vmul.f32 %v419, 0.5
  %v421 = vadd.f32 %v420, 0.5
  %v422 = vmul.f32 %v415, 0.5
  %v423 = vtanh.pop %v422
  %v424 = vmul.f32 %v423, 0.5
  %v425 = vadd.f32 %v424, 0.5
  %v426 = vtanh.pop %v416
  %v427 = vmul.f32 %v417, 0.5
  %v428 = vtanh.pop %v427
  %v429 = vmul.f32 %v428, 0.5
  %v430 = vadd.f32 %v429, 0.5
  %v431 = vmul.f32 %v425, %v320
  %v432 = vmul.f32 %v421, %v426
  %v433 = vadd.f32 %v431, %v432
  %v434 = vtanh.pop %v433
  %v435 = vmul.f32 %v430, %v434
  %s436 = scalar_lea.vmem [#allocation4], 8
  %437 = vst [vmem:[%s436] sm:$0xff] %v435
  %s438 = scalar_lea.vmem %s0, 32
  %v439 = vld [vmem:[%s438] sm:$0xff]
  %v440 = vld [vmem:[%s438 + $0x8] sm:$0xff]
  %v441 = vunpack.c.l.bf16 %v439
  %v442 = vunpack.c.h.bf16 %v439
  %v443 = vunpack.c.l.bf16 %v440
  %v444 = vunpack.c.h.bf16 %v440
  %v445 = vpack.c.bf16 %v435, %v435
  %446 = vmatprep.subr.bf16.mxu0 %v156
  %447 = vmatpush1.bf16.msra.mxu0 %v155
  %448 = vmatprep.subr.bf16.mxu0 %v160
  %449 = vmatpush1.bf16.msra.mxu0 %v159
  %450 = vmatprep.subr.bf16.mxu0 %v164
  %451 = vmatpush1.bf16.msra.mxu0 %v163
  %452 = vmatprep.subr.bf16.mxu0 %v168
  %453 = vmatpush1.bf16.msra.mxu0 %v167
  %454 = vmatprep.subr.bf16.mxu0 %v172
  %455 = vmatpush1.bf16.msra.mxu0 %v171
  %456 = vmatprep.subr.bf16.mxu0 %v176
  %457 = vmatpush1.bf16.msra.mxu0 %v175
  %458 = vmatprep.subr.bf16.mxu0 %v180
  %459 = vmatpush1.bf16.msra.mxu0 %v179
  %460 = vmatprep.subr.bf16.mxu0 %v184
  %461 = vmatpush1.bf16.msra.mxu0 %v183
  %462 = vmatprep.subr.bf16.mxu0 0
  %463 = vmatpush1.bf16.msra.mxu0 0
  %464 = vmatprep.subr.bf16.mxu0 0
  %465 = vmatpush1.bf16.msra.mxu0 0
  %466 = vmatprep.subr.bf16.mxu0 0
  %467 = vmatpush1.bf16.msra.mxu0 0
  %468 = vmatprep.subr.bf16.mxu0 0
  %469 = vmatpush1.bf16.msra.mxu0 0
  %470 = vmatprep.subr.bf16.mxu0 0
  %471 = vmatpush1.bf16.msra.mxu0 0
  %472 = vmatprep.subr.bf16.mxu0 0
  %473 = vmatpush1.bf16.msra.mxu0 0
  %474 = vmatprep.subr.bf16.mxu0 0
  %475 = vmatpush1.bf16.msra.mxu0 0
  %476 = vmatprep.subr.bf16.mxu0 0
  %477 = vmatpush1.bf16.msra.mxu0 0
  %478 = vmatprep.mubr.bf16.mxu0 0
  %479 = vmatmul.mubr.bf16.gmra.mrb[0].mxu0 %v445
  %v480 = vpop.f32.mrb[0].mxu0
  %v481 = vadd.f32 0.0, %v480
  %v482 = vpop.f32.mrb[0].mxu0
  %v483 = vadd.f32 0.0, %v482
  %v484 = vpop.f32.mrb[0].mxu0
  %v485 = vpop.f32.mrb[0].mxu0
  %486 = vdwg.mxu0
  %487 = vmatprep.subr.bf16.mxu0 %v158
  %488 = vmatpush1.bf16.msra.mxu0 %v157
  %489 = vmatprep.subr.bf16.mxu0 %v162
  %490 = vmatpush1.bf16.msra.mxu0 %v161
  %491 = vmatprep.subr.bf16.mxu0 %v166
  %492 = vmatpush1.bf16.msra.mxu0 %v165
  %493 = vmatprep.subr.bf16.mxu0 %v170
  %494 = vmatpush1.bf16.msra.mxu0 %v169
  %495 = vmatprep.subr.bf16.mxu0 %v174
  %496 = vmatpush1.bf16.msra.mxu0 %v173
  %497 = vmatprep.subr.bf16.mxu0 %v178
  %498 = vmatpush1.bf16.msra.mxu0 %v177
  %499 = vmatprep.subr.bf16.mxu0 %v182
  %500 = vmatpush1.bf16.msra.mxu0 %v181
  %501 = vmatprep.subr.bf16.mxu0 %v186
  %502 = vmatpush1.bf16.msra.mxu0 %v185
  %503 = vmatprep.subr.bf16.mxu0 0
  %504 = vmatpush1.bf16.msra.mxu0 0
  %505 = vmatprep.subr.bf16.mxu0 0
  %506 = vmatpush1.bf16.msra.mxu0 0
  %507 = vmatprep.subr.bf16.mxu0 0
  %508 = vmatpush1.bf16.msra.mxu0 0
  %509 = vmatprep.subr.bf16.mxu0 0
  %510 = vmatpush1.bf16.msra.mxu0 0
  %511 = vmatprep.subr.bf16.mxu0 0
  %512 = vmatpush1.bf16.msra.mxu0 0
  %513 = vmatprep.subr.bf16.mxu0 0
  %514 = vmatpush1.bf16.msra.mxu0 0
  %515 = vmatprep.subr.bf16.mxu0 0
  %516 = vmatpush1.bf16.msra.mxu0 0
  %517 = vmatprep.subr.bf16.mxu0 0
  %518 = vmatpush1.bf16.msra.mxu0 0
  %519 = vmatprep.mubr.bf16.mxu0 0
  %520 = vmatmul.mubr.bf16.gmra.mrb[0].mxu0 %v445
  %v521 = vpop.f32.mrb[0].mxu0
  %v522 = vadd.f32 0.0, %v521
  %v523 = vpop.f32.mrb[0].mxu0
  %v524 = vadd.f32 0.0, %v523
  %v525 = vpop.f32.mrb[0].mxu0
  %v526 = vpop.f32.mrb[0].mxu0
  %527 = vdwg.mxu0
  %v528 = vadd.f32 %v441, %v481
  %v529 = vadd.f32 %v442, %v483
  %v530 = vadd.f32 %v443, %v522
  %v531 = vadd.f32 %v444, %v524
  %v532 = vmul.f32 %v528, 0.5
  %v533 = vtanh.pop %v532
  %v534 = vmul.f32 %v533, 0.5
  %v535 = vadd.f32 %v534, 0.5
  %v536 = vmul.f32 %v529, 0.5
  %v537 = vtanh.pop %v536
  %v538 = vmul.f32 %v537, 0.5
  %v539 = vadd.f32 %v538, 0.5
  %v540 = vtanh.pop %v530
  %v541 = vmul.f32 %v531, 0.5
  %v542 = vtanh.pop %v541
  %v543 = vmul.f32 %v542, 0.5
  %v544 = vadd.f32 %v543, 0.5
  %v545 = vmul.f32 %v539, %v433
  %v546 = vmul.f32 %v535, %v540
  %v547 = vadd.f32 %v545, %v546
  %v548 = vtanh.pop %v547
  %v549 = vmul.f32 %v544, %v548
  %s550 = scalar_lea.vmem [#allocation4], 16
  %551 = vst [vmem:[%s550] sm:$0xff] %v549
  %s552 = scalar_lea.vmem %s0, 48
  %v553 = vld [vmem:[%s552] sm:$0xff]
  %v554 = vld [vmem:[%s552 + $0x8] sm:$0xff]
  %v555 = vunpack.c.l.bf16 %v553
  %v556 = vunpack.c.h.bf16 %v553
  %v557 = vunpack.c.l.bf16 %v554
  %v558 = vunpack.c.h.bf16 %v554
  %v559 = vpack.c.bf16 %v549, %v549
  %560 = vmatprep.subr.bf16.mxu0 %v156
  %561 = vmatpush1.bf16.msra.mxu0 %v155
  %562 = vmatprep.subr.bf16.mxu0 %v160
  %563 = vmatpush1.bf16.msra.mxu0 %v159
  %564 = vmatprep.subr.bf16.mxu0 %v164
  %565 = vmatpush1.bf16.msra.mxu0 %v163
  %566 = vmatprep.subr.bf16.mxu0 %v168
  %567 = vmatpush1.bf16.msra.mxu0 %v167
  %568 = vmatprep.subr.bf16.mxu0 %v172
  %569 = vmatpush1.bf16.msra.mxu0 %v171
  %570 = vmatprep.subr.bf16.mxu0 %v176
  %571 = vmatpush1.bf16.msra.mxu0 %v175
  %572 = vmatprep.subr.bf16.mxu0 %v180
  %573 = vmatpush1.bf16.msra.mxu0 %v179
  %574 = vmatprep.subr.bf16.mxu0 %v184
  %575 = vmatpush1.bf16.msra.mxu0 %v183
  %576 = vmatprep.subr.bf16.mxu0 0
  %577 = vmatpush1.bf16.msra.mxu0 0
  %578 = vmatprep.subr.bf16.mxu0 0
  %579 = vmatpush1.bf16.msra.mxu0 0
  %580 = vmatprep.subr.bf16.mxu0 0
  %581 = vmatpush1.bf16.msra.mxu0 0
  %582 = vmatprep.subr.bf16.mxu0 0
  %583 = vmatpush1.bf16.msra.mxu0 0
  %584 = vmatprep.subr.bf16.mxu0 0
  %585 = vmatpush1.bf16.msra.mxu0 0
  %586 = vmatprep.subr.bf16.mxu0 0
  %587 = vmatpush1.bf16.msra.mxu0 0
  %588 = vmatprep.subr.bf16.mxu0 0
  %589 = vmatpush1.bf16.msra.mxu0 0
  %590 = vmatprep.subr.bf16.mxu0 0
  %591 = vmatpush1.bf16.msra.mxu0 0
  %592 = vmatprep.mubr.bf16.mxu0 0
  %593 = vmatmul.mubr.bf16.gmra.mrb[0].mxu0 %v559
  %v594 = vpop.f32.mrb[0].mxu0
  %v595 = vadd.f32 0.0, %v594
  %v596 = vpop.f32.mrb[0].mxu0
  %v597 = vadd.f32 0.0, %v596
  %v598 = vpop.f32.mrb[0].mxu0
  %v599 = vpop.f32.mrb[0].mxu0
  %600 = vdwg.mxu0
  %601 = vmatprep.subr.bf16.mxu0 %v158
  %602 = vmatpush1.bf16.msra.mxu0 %v157
  %603 = vmatprep.subr.bf16.mxu0 %v162
  %604 = vmatpush1.bf16.msra.mxu0 %v161
  %605 = vmatprep.subr.bf16.mxu0 %v166
  %606 = vmatpush1.bf16.msra.mxu0 %v165
  %607 = vmatprep.subr.bf16.mxu0 %v170
  %608 = vmatpush1.bf16.msra.mxu0 %v169
  %609 = vmatprep.subr.bf16.mxu0 %v174
  %610 = vmatpush1.bf16.msra.mxu0 %v173
  %611 = vmatprep.subr.bf16.mxu0 %v178
  %612 = vmatpush1.bf16.msra.mxu0 %v177
  %613 = vmatprep.subr.bf16.mxu0 %v182
  %614 = vmatpush1.bf16.msra.mxu0 %v181
  %615 = vmatprep.subr.bf16.mxu0 %v186
  %616 = vmatpush1.bf16.msra.mxu0 %v185
  %617 = vmatprep.subr.bf16.mxu0 0
  %618 = vmatpush1.bf16.msra.mxu0 0
  %619 = vmatprep.subr.bf16.mxu0 0
  %620 = vmatpush1.bf16.msra.mxu0 0
  %621 = vmatprep.subr.bf16.mxu0 0
  %622 = vmatpush1.bf16.msra.mxu0 0
  %623 = vmatprep.subr.bf16.mxu0 0
  %624 = vmatpush1.bf16.msra.mxu0 0
  %625 = vmatprep.subr.bf16.mxu0 0
  %626 = vmatpush1.bf16.msra.mxu0 0
  %627 = vmatprep.subr.bf16.mxu0 0
  %628 = vmatpush1.bf16.msra.mxu0 0
  %629 = vmatprep.subr.bf16.mxu0 0
  %630 = vmatpush1.bf16.msra.mxu0 0
  %631 = vmatprep.subr.bf16.mxu0 0
  %632 = vmatpush1.bf16.msra.mxu0 0
  %633 = vmatprep.mubr.bf16.mxu0 0
  %634 = vmatmul.mubr.bf16.gmra.mrb[0].mxu0 %v559
  %v635 = vpop.f32.mrb[0].mxu0
  %v636 = vadd.f32 0.0, %v635
  %v637 = vpop.f32.mrb[0].mxu0
  %v638 = vadd.f32 0.0, %v637
  %v639 = vpop.f32.mrb[0].mxu0
  %v640 = vpop.f32.mrb[0].mxu0
  %641 = vdwg.mxu0
  %v642 = vadd.f32 %v555, %v595
  %v643 = vadd.f32 %v556, %v597
  %v644 = vadd.f32 %v557, %v636
  %v645 = vadd.f32 %v558, %v638
  %v646 = vmul.f32 %v642, 0.5
  %v647 = vtanh.pop %v646
  %v648 = vmul.f32 %v647, 0.5
  %v649 = vadd.f32 %v648, 0.5
  %v650 = vmul.f32 %v643, 0.5
  %v651 = vtanh.pop %v650
  %v652 = vmul.f32 %v651, 0.5
  %v653 = vadd.f32 %v652, 0.5
  %v654 = vtanh.pop %v644
  %v655 = vmul.f32 %v645, 0.5
  %v656 = vtanh.pop %v655
  %v657 = vmul.f32 %v656, 0.5
  %v658 = vadd.f32 %v657, 0.5
  %v659 = vmul.f32 %v653, %v547
  %v660 = vmul.f32 %v649, %v654
  %v661 = vadd.f32 %v659, %v660
  %v662 = vtanh.pop %v661
  %v663 = vmul.f32 %v658, %v662
  %s664 = scalar_lea.vmem [#allocation4], 24
  %665 = vst [vmem:[%s664] sm:$0xff] %v663
  %s666 = scalar_lea.vmem %s0, 64
  %v667 = vld [vmem:[%s666] sm:$0xff]
  %v668 = vld [vmem:[%s666 + $0x8] sm:$0xff]
  %v669 = vunpack.c.l.bf16 %v667
  %v670 = vunpack.c.h.bf16 %v667
  %v671 = vunpack.c.l.bf16 %v668
  %v672 = vunpack.c.h.bf16 %v668
  %v673 = vpack.c.bf16 %v663, %v663
  %674 = vmatprep.subr.bf16.mxu0 %v156
  %675 = vmatpush1.bf16.msra.mxu0 %v155
  %676 = vmatprep.subr.bf16.mxu0 %v160
  %677 = vmatpush1.bf16.msra.mxu0 %v159
  %678 = vmatprep.subr.bf16.mxu0 %v164
  %679 = vmatpush1.bf16.msra.mxu0 %v163
  %680 = vmatprep.subr.bf16.mxu0 %v168
  %681 = vmatpush1.bf16.msra.mxu0 %v167
  %682 = vmatprep.subr.bf16.mxu0 %v172
  %683 = vmatpush1.bf16.msra.mxu0 %v171
  %684 = vmatprep.subr.bf16.mxu0 %v176
  %685 = vmatpush1.bf16.msra.mxu0 %v175
  %686 = vmatprep.subr.bf16.mxu0 %v180
  %687 = vmatpush1.bf16.msra.mxu0 %v179
  %688 = vmatprep.subr.bf16.mxu0 %v184
  %689 = vmatpush1.bf16.msra.mxu0 %v183
  %690 = vmatprep.subr.bf16.mxu0 0
  %691 = vmatpush1.bf16.msra.mxu0 0
  %692 = vmatprep.subr.bf16.mxu0 0
  %693 = vmatpush1.bf16.msra.mxu0 0
  %694 = vmatprep.subr.bf16.mxu0 0
  %695 = vmatpush1.bf16.msra.mxu0 0
  %696 = vmatprep.subr.bf16.mxu0 0
  %697 = vmatpush1.bf16.msra.mxu0 0
  %698 = vmatprep.subr.bf16.mxu0 0
  %699 = vmatpush1.bf16.msra.mxu0 0
  %700 = vmatprep.subr.bf16.mxu0 0
  %701 = vmatpush1.bf16.msra.mxu0 0
  %702 = vmatprep.subr.bf16.mxu0 0
  %703 = vmatpush1.bf16.msra.mxu0 0
  %704 = vmatprep.subr.bf16.mxu0 0
  %705 = vmatpush1.bf16.msra.mxu0 0
  %706 = vmatprep.mubr.bf16.mxu0 0
  %707 = vmatmul.mubr.bf16.gmra.mrb[0].mxu0 %v673
  %v708 = vpop.f32.mrb[0].mxu0
  %v709 = vadd.f32 0.0, %v708
  %v710 = vpop.f32.mrb[0].mxu0
  %v711 = vadd.f32 0.0, %v710
  %v712 = vpop.f32.mrb[0].mxu0
  %v713 = vpop.f32.mrb[0].mxu0
  %714 = vdwg.mxu0
  %715 = vmatprep.subr.bf16.mxu0 %v158
  %716 = vmatpush1.bf16.msra.mxu0 %v157
  %717 = vmatprep.subr.bf16.mxu0 %v162
  %718 = vmatpush1.bf16.msra.mxu0 %v161
  %719 = vmatprep.subr.bf16.mxu0 %v166
  %720 = vmatpush1.bf16.msra.mxu0 %v165
  %721 = vmatprep.subr.bf16.mxu0 %v170
  %722 = vmatpush1.bf16.msra.mxu0 %v169
  %723 = vmatprep.subr.bf16.mxu0 %v174
  %724 = vmatpush1.bf16.msra.mxu0 %v173
  %725 = vmatprep.subr.bf16.mxu0 %v178
  %726 = vmatpush1.bf16.msra.mxu0 %v177
  %727 = vmatprep.subr.bf16.mxu0 %v182
  %728 = vmatpush1.bf16.msra.mxu0 %v181
  %729 = vmatprep.subr.bf16.mxu0 %v186
  %730 = vmatpush1.bf16.msra.mxu0 %v185
  %731 = vmatprep.subr.bf16.mxu0 0
  %732 = vmatpush1.bf16.msra.mxu0 0
  %733 = vmatprep.subr.bf16.mxu0 0
  %734 = vmatpush1.bf16.msra.mxu0 0
  %735 = vmatprep.subr.bf16.mxu0 0
  %736 = vmatpush1.bf16.msra.mxu0 0
  %737 = vmatprep.subr.bf16.mxu0 0
  %738 = vmatpush1.bf16.msra.mxu0 0
  %739 = vmatprep.subr.bf16.mxu0 0
  %740 = vmatpush1.bf16.msra.mxu0 0
  %741 = vmatprep.subr.bf16.mxu0 0
  %742 = vmatpush1.bf16.msra.mxu0 0
  %743 = vmatprep.subr.bf16.mxu0 0
  %744 = vmatpush1.bf16.msra.mxu0 0
  %745 = vmatprep.subr.bf16.mxu0 0
  %746 = vmatpush1.bf16.msra.mxu0 0
  %747 = vmatprep.mubr.bf16.mxu0 0
  %748 = vmatmul.mubr.bf16.gmra.mrb[0].mxu0 %v673
  %v749 = vpop.f32.mrb[0].mxu0
  %v750 = vadd.f32 0.0, %v749
  %v751 = vpop.f32.mrb[0].mxu0
  %v752 = vadd.f32 0.0, %v751
  %v753 = vpop.f32.mrb[0].mxu0
  %v754 = vpop.f32.mrb[0].mxu0
  %755 = vdwg.mxu0
  %v756 = vadd.f32 %v669, %v709
  %v757 = vadd.f32 %v670, %v711
  %v758 = vadd.f32 %v671, %v750
  %v759 = vadd.f32 %v672, %v752
  %v760 = vmul.f32 %v756, 0.5
  %v761 = vtanh.pop %v760
  %v762 = vmul.f32 %v761, 0.5
  %v763 = vadd.f32 %v762, 0.5
  %v764 = vmul.f32 %v757, 0.5
  %v765 = vtanh.pop %v764
  %v766 = vmul.f32 %v765, 0.5
  %v767 = vadd.f32 %v766, 0.5
  %v768 = vtanh.pop %v758
  %v769 = vmul.f32 %v759, 0.5
  %v770 = vtanh.pop %v769
  %v771 = vmul.f32 %v770, 0.5
  %v772 = vadd.f32 %v771, 0.5
  %v773 = vmul.f32 %v767, %v661
  %v774 = vmul.f32 %v763, %v768
  %v775 = vadd.f32 %v773, %v774
  %v776 = vtanh.pop %v775
  %v777 = vmul.f32 %v772, %v776
  %s778 = scalar_lea.vmem [#allocation4], 32
  %779 = vst [vmem:[%s778] sm:$0xff] %v777
  %s780 = scalar_lea.vmem %s0, 80
  %v781 = vld [vmem:[%s780] sm:$0xff]
  %v782 = vld [vmem:[%s780 + $0x8] sm:$0xff]
  %v783 = vunpack.c.l.bf16 %v781
  %v784 = vunpack.c.h.bf16 %v781
  %v785 = vunpack.c.l.bf16 %v782
  %v786 = vunpack.c.h.bf16 %v782
  %v787 = vpack.c.bf16 %v777, %v777
  %788 = vmatprep.subr.bf16.mxu0 %v156
  %789 = vmatpush1.bf16.msra.mxu0 %v155
  %790 = vmatprep.subr.bf16.mxu0 %v160
  %791 = vmatpush1.bf16.msra.mxu0 %v159
  %792 = vmatprep.subr.bf16.mxu0 %v164
  %793 = vmatpush1.bf16.msra.mxu0 %v163
  %794 = vmatprep.subr.bf16.mxu0 %v168
  %795 = vmatpush1.bf16.msra.mxu0 %v167
  %796 = vmatprep.subr.bf16.mxu0 %v172
  %797 = vmatpush1.bf16.msra.mxu0 %v171
  %798 = vmatprep.subr.bf16.mxu0 %v176
  %799 = vmatpush1.bf16.msra.mxu0 %v175
  %800 = vmatprep.subr.bf16.mxu0 %v180
  %801 = vmatpush1.bf16.msra.mxu0 %v179
  %802 = vmatprep.subr.bf16.mxu0 %v184
  %803 = vmatpush1.bf16.msra.mxu0 %v183
  %804 = vmatprep.subr.bf16.mxu0 0
  %805 = vmatpush1.bf16.msra.mxu0 0
  %806 = vmatprep.subr.bf16.mxu0 0
  %807 = vmatpush1.bf16.msra.mxu0 0
  %808 = vmatprep.subr.bf16.mxu0 0
  %809 = vmatpush1.bf16.msra.mxu0 0
  %810 = vmatprep.subr.bf16.mxu0 0
  %811 = vmatpush1.bf16.msra.mxu0 0
  %812 = vmatprep.subr.bf16.mxu0 0
  %813 = vmatpush1.bf16.msra.mxu0 0
  %814 = vmatprep.subr.bf16.mxu0 0
  %815 = vmatpush1.bf16.msra.mxu0 0
  %816 = vmatprep.subr.bf16.mxu0 0
  %817 = vmatpush1.bf16.msra.mxu0 0
  %818 = vmatprep.subr.bf16.mxu0 0
  %819 = vmatpush1.bf16.msra.mxu0 0
  %820 = vmatprep.mubr.bf16.mxu0 0
  %821 = vmatmul.mubr.bf16.gmra.mrb[0].mxu0 %v787
  %v822 = vpop.f32.mrb[0].mxu0
  %v823 = vadd.f32 0.0, %v822
  %v824 = vpop.f32.mrb[0].mxu0
  %v825 = vadd.f32 0.0, %v824
  %v826 = vpop.f32.mrb[0].mxu0
  %v827 = vpop.f32.mrb[0].mxu0
  %828 = vdwg.mxu0
  %829 = vmatprep.subr.bf16.mxu0 %v158
  %830 = vmatpush1.bf16.msra.mxu0 %v157
  %831 = vmatprep.subr.bf16.mxu0 %v162
  %832 = vmatpush1.bf16.msra.mxu0 %v161
  %833 = vmatprep.subr.bf16.mxu0 %v166
  %834 = vmatpush1.bf16.msra.mxu0 %v165
  %835 = vmatprep.subr.bf16.mxu0 %v170
  %836 = vmatpush1.bf16.msra.mxu0 %v169
  %837 = vmatprep.subr.bf16.mxu0 %v174
  %838 = vmatpush1.bf16.msra.mxu0 %v173
  %839 = vmatprep.subr.bf16.mxu0 %v178
  %840 = vmatpush1.bf16.msra.mxu0 %v177
  %841 = vmatprep.subr.bf16.mxu0 %v182
  %842 = vmatpush1.bf16.msra.mxu0 %v181
  %843 = vmatprep.subr.bf16.mxu0 %v186
  %844 = vmatpush1.bf16.msra.mxu0 %v185
  %845 = vmatprep.subr.bf16.mxu0 0
  %846 = vmatpush1.bf16.msra.mxu0 0
  %847 = vmatprep.subr.bf16.mxu0 0
  %848 = vmatpush1.bf16.msra.mxu0 0
  %849 = vmatprep.subr.bf16.mxu0 0
  %850 = vmatpush1.bf16.msra.mxu0 0
  %851 = vmatprep.subr.bf16.mxu0 0
  %852 = vmatpush1.bf16.msra.mxu0 0
  %853 = vmatprep.subr.bf16.mxu0 0
  %854 = vmatpush1.bf16.msra.mxu0 0
  %855 = vmatprep.subr.bf16.mxu0 0
  %856 = vmatpush1.bf16.msra.mxu0 0
  %857 = vmatprep.subr.bf16.mxu0 0
  %858 = vmatpush1.bf16.msra.mxu0 0
  %859 = vmatprep.subr.bf16.mxu0 0
  %860 = vmatpush1.bf16.msra.mxu0 0
  %861 = vmatprep.mubr.bf16.mxu0 0
  %862 = vmatmul.mubr.bf16.gmra.mrb[0].mxu0 %v787
  %v863 = vpop.f32.mrb[0].mxu0
  %v864 = vadd.f32 0.0, %v863
  %v865 = vpop.f32.mrb[0].mxu0
  %v866 = vadd.f32 0.0, %v865
  %v867 = vpop.f32.mrb[0].mxu0
  %v868 = vpop.f32.mrb[0].mxu0
  %869 = vdwg.mxu0
  %v870 = vadd.f32 %v783, %v823
  %v871 = vadd.f32 %v784, %v825
  %v872 = vadd.f32 %v785, %v864
  %v873 = vadd.f32 %v786, %v866
  %v874 = vmul.f32 %v870, 0.5
  %v875 = vtanh.pop %v874
  %v876 = vmul.f32 %v875, 0.5
  %v877 = vadd.f32 %v876, 0.5
  %v878 = vmul.f32 %v871, 0.5
  %v879 = vtanh.pop %v878
  %v880 = vmul.f32 %v879, 0.5
  %v881 = vadd.f32 %v880, 0.5
  %v882 = vtanh.pop %v872
  %v883 = vmul.f32 %v873, 0.5
  %v884 = vtanh.pop %v883
  %v885 = vmul.f32 %v884, 0.5
  %v886 = vadd.f32 %v885, 0.5
  %v887 = vmul.f32 %v881, %v775
  %v888 = vmul.f32 %v877, %v882
  %v889 = vadd.f32 %v887, %v888
  %v890 = vtanh.pop %v889
  %v891 = vmul.f32 %v886, %v890
  %s892 = scalar_lea.vmem [#allocation4], 40
  %893 = vst [vmem:[%s892] sm:$0xff] %v891
  %s894 = scalar_lea.vmem %s0, 96
  %v895 = vld [vmem:[%s894] sm:$0xff]
  %v896 = vld [vmem:[%s894 + $0x8] sm:$0xff]
  %v897 = vunpack.c.l.bf16 %v895
  %v898 = vunpack.c.h.bf16 %v895
  %v899 = vunpack.c.l.bf16 %v896
  %v900 = vunpack.c.h.bf16 %v896
  %v901 = vpack.c.bf16 %v891, %v891
  %902 = vmatprep.subr.bf16.mxu0 %v156
  %903 = vmatpush1.bf16.msra.mxu0 %v155
  %904 = vmatprep.subr.bf16.mxu0 %v160
  %905 = vmatpush1.bf16.msra.mxu0 %v159
  %906 = vmatprep.subr.bf16.mxu0 %v164
  %907 = vmatpush1.bf16.msra.mxu0 %v163
  %908 = vmatprep.subr.bf16.mxu0 %v168
  %909 = vmatpush1.bf16.msra.mxu0 %v167
  %910 = vmatprep.subr.bf16.mxu0 %v172
  %911 = vmatpush1.bf16.msra.mxu0 %v171
  %912 = vmatprep.subr.bf16.mxu0 %v176
  %913 = vmatpush1.bf16.msra.mxu0 %v175
  %914 = vmatprep.subr.bf16.mxu0 %v180
  %915 = vmatpush1.bf16.msra.mxu0 %v179
  %916 = vmatprep.subr.bf16.mxu0 %v184
  %917 = vmatpush1.bf16.msra.mxu0 %v183
  %918 = vmatprep.subr.bf16.mxu0 0
  %919 = vmatpush1.bf16.msra.mxu0 0
  %920 = vmatprep.subr.bf16.mxu0 0
  %921 = vmatpush1.bf16.msra.mxu0 0
  %922 = vmatprep.subr.bf16.mxu0 0
  %923 = vmatpush1.bf16.msra.mxu0 0
  %924 = vmatprep.subr.bf16.mxu0 0
  %925 = vmatpush1.bf16.msra.mxu0 0
  %926 = vmatprep.subr.bf16.mxu0 0
  %927 = vmatpush1.bf16.msra.mxu0 0
  %928 = vmatprep.subr.bf16.mxu0 0
  %929 = vmatpush1.bf16.msra.mxu0 0
  %930 = vmatprep.subr.bf16.mxu0 0
  %931 = vmatpush1.bf16.msra.mxu0 0
  %932 = vmatprep.subr.bf16.mxu0 0
  %933 = vmatpush1.bf16.msra.mxu0 0
  %934 = vmatprep.mubr.bf16.mxu0 0
  %935 = vmatmul.mubr.bf16.gmra.mrb[0].mxu0 %v901
  %v936 = vpop.f32.mrb[0].mxu0
  %v937 = vadd.f32 0.0, %v936
  %v938 = vpop.f32.mrb[0].mxu0
  %v939 = vadd.f32 0.0, %v938
  %v940 = vpop.f32.mrb[0].mxu0
  %v941 = vpop.f32.mrb[0].mxu0
  %942 = vdwg.mxu0
  %943 = vmatprep.subr.bf16.mxu0 %v158
  %944 = vmatpush1.bf16.msra.mxu0 %v157
  %945 = vmatprep.subr.bf16.mxu0 %v162
  %946 = vmatpush1.bf16.msra.mxu0 %v161
  %947 = vmatprep.subr.bf16.mxu0 %v166
  %948 = vmatpush1.bf16.msra.mxu0 %v165
  %949 = vmatprep.subr.bf16.mxu0 %v170
  %950 = vmatpush1.bf16.msra.mxu0 %v169
  %951 = vmatprep.subr.bf16.mxu0 %v174
  %952 = vmatpush1.bf16.msra.mxu0 %v173
  %953 = vmatprep.subr.bf16.mxu0 %v178
  %954 = vmatpush1.bf16.msra.mxu0 %v177
  %955 = vmatprep.subr.bf16.mxu0 %v182
  %956 = vmatpush1.bf16.msra.mxu0 %v181
  %957 = vmatprep.subr.bf16.mxu0 %v186
  %958 = vmatpush1.bf16.msra.mxu0 %v185
  %959 = vmatprep.subr.bf16.mxu0 0
  %960 = vmatpush1.bf16.msra.mxu0 0
  %961 = vmatprep.subr.bf16.mxu0 0
  %962 = vmatpush1.bf16.msra.mxu0 0
  %963 = vmatprep.subr.bf16.mxu0 0
  %964 = vmatpush1.bf16.msra.mxu0 0
  %965 = vmatprep.subr.bf16.mxu0 0
  %966 = vmatpush1.bf16.msra.mxu0 0
  %967 = vmatprep.subr.bf16.mxu0 0
  %968 = vmatpush1.bf16.msra.mxu0 0
  %969 = vmatprep.subr.bf16.mxu0 0
  %970 = vmatpush1.bf16.msra.mxu0 0
  %971 = vmatprep.subr.bf16.mxu0 0
  %972 = vmatpush1.bf16.msra.mxu0 0
  %973 = vmatprep.subr.bf16.mxu0 0
  %974 = vmatpush1.bf16.msra.mxu0 0
  %975 = vmatprep.mubr.bf16.mxu0 0
  %976 = vmatmul.mubr.bf16.gmra.mrb[0].mxu0 %v901
  %v977 = vpop.f32.mrb[0].mxu0
  %v978 = vadd.f32 0.0, %v977
  %v979 = vpop.f32.mrb[0].mxu0
  %v980 = vadd.f32 0.0, %v979
  %v981 = vpop.f32.mrb[0].mxu0
  %v982 = vpop.f32.mrb[0].mxu0
  %983 = vdwg.mxu0
  %v984 = vadd.f32 %v897, %v937
  %v985 = vadd.f32 %v898, %v939
  %v986 = vadd.f32 %v899, %v978
  %v987 = vadd.f32 %v900, %v980
  %v988 = vmul.f32 %v984, 0.5
  %v989 = vtanh.pop %v988
  %v990 = vmul.f32 %v989, 0.5
  %v991 = vadd.f32 %v990, 0.5
  %v992 = vmul.f32 %v985, 0.5
  %v993 = vtanh.pop %v992
  %v994 = vmul.f32 %v993, 0.5
  %v995 = vadd.f32 %v994, 0.5
  %v996 = vtanh.pop %v986
  %v997 = vmul.f32 %v987, 0.5
  %v998 = vtanh.pop %v997
  %v999 = vmul.f32 %v998, 0.5
  %v1000 = vadd.f32 %v999, 0.5
  %v1001 = vmul.f32 %v995, %v889
  %v1002 = vmul.f32 %v991, %v996
  %v1003 = vadd.f32 %v1001, %v1002
  %v1004 = vtanh.pop %v1003
  %v1005 = vmul.f32 %v1000, %v1004
  %s1006 = scalar_lea.vmem [#allocation4], 48
  %1007 = vst [vmem:[%s1006] sm:$0xff] %v1005
  %s1008 = scalar_lea.vmem %s0, 112
  %v1009 = vld [vmem:[%s1008] sm:$0xff]
  %v1010 = vld [vmem:[%s1008 + $0x8] sm:$0xff]
  %v1011 = vunpack.c.l.bf16 %v1009
  %v1012 = vunpack.c.h.bf16 %v1009
  %v1013 = vunpack.c.l.bf16 %v1010
  %v1014 = vunpack.c.h.bf16 %v1010
  %v1015 = vpack.c.bf16 %v1005, %v1005
  %1016 = vmatprep.subr.bf16.mxu0 %v156
  %1017 = vmatpush1.bf16.msra.mxu0 %v155
  %1018 = vmatprep.subr.bf16.mxu0 %v160
  %1019 = vmatpush1.bf16.msra.mxu0 %v159
  %1020 = vmatprep.subr.bf16.mxu0 %v164
  %1021 = vmatpush1.bf16.msra.mxu0 %v163
  %1022 = vmatprep.subr.bf16.mxu0 %v168
  %1023 = vmatpush1.bf16.msra.mxu0 %v167
  %1024 = vmatprep.subr.bf16.mxu0 %v172
  %1025 = vmatpush1.bf16.msra.mxu0 %v171
  %1026 = vmatprep.subr.bf16.mxu0 %v176
  %1027 = vmatpush1.bf16.msra.mxu0 %v175
  %1028 = vmatprep.subr.bf16.mxu0 %v180
  %1029 = vmatpush1.bf16.msra.mxu0 %v179
  %1030 = vmatprep.subr.bf16.mxu0 %v184
  %1031 = vmatpush1.bf16.msra.mxu0 %v183
  %1032 = vmatprep.subr.bf16.mxu0 0
  %1033 = vmatpush1.bf16.msra.mxu0 0
  %1034 = vmatprep.subr.bf16.mxu0 0
  %1035 = vmatpush1.bf16.msra.mxu0 0
  %1036 = vmatprep.subr.bf16.mxu0 0
  %1037 = vmatpush1.bf16.msra.mxu0 0
  %1038 = vmatprep.subr.bf16.mxu0 0
  %1039 = vmatpush1.bf16.msra.mxu0 0
  %1040 = vmatprep.subr.bf16.mxu0 0
  %1041 = vmatpush1.bf16.msra.mxu0 0
  %1042 = vmatprep.subr.bf16.mxu0 0
  %1043 = vmatpush1.bf16.msra.mxu0 0
  %1044 = vmatprep.subr.bf16.mxu0 0
  %1045 = vmatpush1.bf16.msra.mxu0 0
  %1046 = vmatprep.subr.bf16.mxu0 0
  %1047 = vmatpush1.bf16.msra.mxu0 0
  %1048 = vmatprep.mubr.bf16.mxu0 0
  %1049 = vmatmul.mubr.bf16.gmra.mrb[0].mxu0 %v1015
  %v1050 = vpop.f32.mrb[0].mxu0
  %v1051 = vadd.f32 0.0, %v1050
  %v1052 = vpop.f32.mrb[0].mxu0
  %v1053 = vadd.f32 0.0, %v1052
  %v1054 = vpop.f32.mrb[0].mxu0
  %v1055 = vpop.f32.mrb[0].mxu0
  %1056 = vdwg.mxu0
  %1057 = vmatprep.subr.bf16.mxu0 %v158
  %1058 = vmatpush1.bf16.msra.mxu0 %v157
  %1059 = vmatprep.subr.bf16.mxu0 %v162
  %1060 = vmatpush1.bf16.msra.mxu0 %v161
  %1061 = vmatprep.subr.bf16.mxu0 %v166
  %1062 = vmatpush1.bf16.msra.mxu0 %v165
  %1063 = vmatprep.subr.bf16.mxu0 %v170
  %1064 = vmatpush1.bf16.msra.mxu0 %v169
  %1065 = vmatprep.subr.bf16.mxu0 %v174
  %1066 = vmatpush1.bf16.msra.mxu0 %v173
  %1067 = vmatprep.subr.bf16.mxu0 %v178
  %1068 = vmatpush1.bf16.msra.mxu0 %v177
  %1069 = vmatprep.subr.bf16.mxu0 %v182
  %1070 = vmatpush1.bf16.msra.mxu0 %v181
  %1071 = vmatprep.subr.bf16.mxu0 %v186
  %1072 = vmatpush1.bf16.msra.mxu0 %v185
  %1073 = vmatprep.subr.bf16.mxu0 0
  %1074 = vmatpush1.bf16.msra.mxu0 0
  %1075 = vmatprep.subr.bf16.mxu0 0
  %1076 = vmatpush1.bf16.msra.mxu0 0
  %1077 = vmatprep.subr.bf16.mxu0 0
  %1078 = vmatpush1.bf16.msra.mxu0 0
  %1079 = vmatprep.subr.bf16.mxu0 0
  %1080 = vmatpush1.bf16.msra.mxu0 0
  %1081 = vmatprep.subr.bf16.mxu0 0
  %1082 = vmatpush1.bf16.msra.mxu0 0
  %1083 = vmatprep.subr.bf16.mxu0 0
  %1084 = vmatpush1.bf16.msra.mxu0 0
  %1085 = vmatprep.subr.bf16.mxu0 0
  %1086 = vmatpush1.bf16.msra.mxu0 0
  %1087 = vmatprep.subr.bf16.mxu0 0
  %1088 = vmatpush1.bf16.msra.mxu0 0
  %1089 = vmatprep.mubr.bf16.mxu0 0
  %1090 = vmatmul.mubr.bf16.gmra.mrb[0].mxu0 %v1015
  %v1091 = vpop.f32.mrb[0].mxu0
  %v1092 = vadd.f32 0.0, %v1091
  %v1093 = vpop.f32.mrb[0].mxu0
  %v1094 = vadd.f32 0.0, %v1093
  %v1095 = vpop.f32.mrb[0].mxu0
  %v1096 = vpop.f32.mrb[0].mxu0
  %1097 = vdwg.mxu0
  %v1098 = vadd.f32 %v1011, %v1051
  %v1099 = vadd.f32 %v1012, %v1053
  %v1100 = vadd.f32 %v1013, %v1092
  %v1101 = vadd.f32 %v1014, %v1094
  %v1102 = vmul.f32 %v1098, 0.5
  %v1103 = vtanh.pop %v1102
  %v1104 = vmul.f32 %v1103, 0.5
  %v1105 = vadd.f32 %v1104, 0.5
  %v1106 = vmul.f32 %v1099, 0.5
  %v1107 = vtanh.pop %v1106
  %v1108 = vmul.f32 %v1107, 0.5
  %v1109 = vadd.f32 %v1108, 0.5
  %v1110 = vtanh.pop %v1100
  %v1111 = vmul.f32 %v1101, 0.5
  %v1112 = vtanh.pop %v1111
  %v1113 = vmul.f32 %v1112, 0.5
  %v1114 = vadd.f32 %v1113, 0.5
  %v1115 = vmul.f32 %v1109, %v1003
  %v1116 = vmul.f32 %v1105, %v1110
  %v1117 = vadd.f32 %v1115, %v1116
  %v1118 = vtanh.pop %v1117
  %v1119 = vmul.f32 %v1114, %v1118
  %s1120 = scalar_lea.vmem [#allocation4], 56
  %1121 = vst [vmem:[%s1120] sm:$0xff] %v1119
  %1122 = vst [vmem:[#allocation2] sm:$0xff] %v1119
  %1123 = vst [vmem:[#allocation3] sm:$0xff] %v1117
  %v1124 = vld [vmem:[#allocation4] sm:$0x1]
  %v1125 = vld [vmem:[#allocation4 + $0x8] sm:$0x1]
  %v1126 = vld [vmem:[#allocation4 + $0x10] sm:$0x1]
  %v1127 = vld [vmem:[#allocation4 + $0x18] sm:$0x1]
  %v1128 = vld [vmem:[#allocation4 + $0x20] sm:$0x1]
  %v1129 = vld [vmem:[#allocation4 + $0x28] sm:$0x1]
  %v1130 = vld [vmem:[#allocation4 + $0x30] sm:$0x1]
  %v1131 = vld [vmem:[#allocation4 + $0x38] sm:$0x1]
  %v1140 = vrot.slane %v1125, 7
  %vm1141 = vcmask 1041409
  %v1142 = vsel %vm1141, %v1140, %v1124
  %v1143 = vrot.slane %v1126, 6
  %vm1144 = vcmask 1042434
  %v1145 = vsel %vm1144, %v1143, %v1142
  %v1146 = vrot.slane %v1127, 5
  %vm1147 = vcmask 1043459
  %v1148 = vsel %vm1147, %v1146, %v1145
  %v1149 = vrot.slane %v1128, 4
  %vm1150 = vcmask 1044484
  %v1151 = vsel %vm1150, %v1149, %v1148
  %v1152 = vrot.slane %v1129, 3
  %vm1153 = vcmask 1045509
  %v1154 = vsel %vm1153, %v1152, %v1151
  %v1155 = vrot.slane %v1130, 2
  %vm1156 = vcmask 1046534
  %v1157 = vsel %vm1156, %v1155, %v1154
  %v1158 = vrot.slane %v1131, 1
  %vm1159 = vcmask 1047559
  %v1160 = vsel %vm1159, %v1158, %v1157
  %1162 = vst [vmem:[%s2] sm:$0xff] %v1160
  %v1163 = vld [vmem:[#allocation4 + $0x1] sm:$0x1]
  %v1164 = vld [vmem:[#allocation4 + $0x9] sm:$0x1]
  %v1165 = vld [vmem:[#allocation4 + $0x11] sm:$0x1]
  %v1166 = vld [vmem:[#allocation4 + $0x19] sm:$0x1]
  %v1167 = vld [vmem:[#allocation4 + $0x21] sm:$0x1]
  %v1168 = vld [vmem:[#allocation4 + $0x29] sm:$0x1]
  %v1169 = vld [vmem:[#allocation4 + $0x31] sm:$0x1]
  %v1170 = vld [vmem:[#allocation4 + $0x39] sm:$0x1]
  %v1179 = vrot.slane %v1164, 7
  %v1180 = vsel %vm1141, %v1179, %v1163
  %v1181 = vrot.slane %v1165, 6
  %v1182 = vsel %vm1144, %v1181, %v1180
  %v1183 = vrot.slane %v1166, 5
  %v1184 = vsel %vm1147, %v1183, %v1182
  %v1185 = vrot.slane %v1167, 4
  %v1186 = vsel %vm1150, %v1185, %v1184
  %v1187 = vrot.slane %v1168, 3
  %v1188 = vsel %vm1153, %v1187, %v1186
  %v1189 = vrot.slane %v1169, 2
  %v1190 = vsel %vm1156, %v1189, %v1188
  %v1191 = vrot.slane %v1170, 1
  %v1192 = vsel %vm1159, %v1191, %v1190
  %s1194 = scalar_lea.vmem %s2, 8
  %1195 = vst [vmem:[%s1194] sm:$0xff] %v1192
  %v1196 = vld [vmem:[#allocation4 + $0x2] sm:$0x1]
  %v1197 = vld [vmem:[#allocation4 + $0xa] sm:$0x1]
  %v1198 = vld [vmem:[#allocation4 + $0x12] sm:$0x1]
  %v1199 = vld [vmem:[#allocation4 + $0x1a] sm:$0x1]
  %v1200 = vld [vmem:[#allocation4 + $0x22] sm:$0x1]
  %v1201 = vld [vmem:[#allocation4 + $0x2a] sm:$0x1]
  %v1202 = vld [vmem:[#allocation4 + $0x32] sm:$0x1]
  %v1203 = vld [vmem:[#allocation4 + $0x3a] sm:$0x1]
  %v1212 = vrot.slane %v1197, 7
  %v1213 = vsel %vm1141, %v1212, %v1196
  %v1214 = vrot.slane %v1198, 6
  %v1215 = vsel %vm1144, %v1214, %v1213
  %v1216 = vrot.slane %v1199, 5
  %v1217 = vsel %vm1147, %v1216, %v1215
  %v1218 = vrot.slane %v1200, 4
  %v1219 = vsel %vm1150, %v1218, %v1217
  %v1220 = vrot.slane %v1201, 3
  %v1221 = vsel %vm1153, %v1220, %v1219
  %v1222 = vrot.slane %v1202, 2
  %v1223 = vsel %vm1156, %v1222, %v1221
  %v1224 = vrot.slane %v1203, 1
  %v1225 = vsel %vm1159, %v1224, %v1223
  %s1227 = scalar_lea.vmem %s2, 16
  %1228 = vst [vmem:[%s1227] sm:$0xff] %v1225
  %v1229 = vld [vmem:[#allocation4 + $0x3] sm:$0x1]
  %v1230 = vld [vmem:[#allocation4 + $0xb] sm:$0x1]
  %v1231 = vld [vmem:[#allocation4 + $0x13] sm:$0x1]
  %v1232 = vld [vmem:[#allocation4 + $0x1b] sm:$0x1]
  %v1233 = vld [vmem:[#allocation4 + $0x23] sm:$0x1]
  %v1234 = vld [vmem:[#allocation4 + $0x2b] sm:$0x1]
  %v1235 = vld [vmem:[#allocation4 + $0x33] sm:$0x1]
  %v1236 = vld [vmem:[#allocation4 + $0x3b] sm:$0x1]
  %v1245 = vrot.slane %v1230, 7
  %v1246 = vsel %vm1141, %v1245, %v1229
  %v1247 = vrot.slane %v1231, 6
  %v1248 = vsel %vm1144, %v1247, %v1246
  %v1249 = vrot.slane %v1232, 5
  %v1250 = vsel %vm1147, %v1249, %v1248
  %v1251 = vrot.slane %v1233, 4
  %v1252 = vsel %vm1150, %v1251, %v1250
  %v1253 = vrot.slane %v1234, 3
  %v1254 = vsel %vm1153, %v1253, %v1252
  %v1255 = vrot.slane %v1235, 2
  %v1256 = vsel %vm1156, %v1255, %v1254
  %v1257 = vrot.slane %v1236, 1
  %v1258 = vsel %vm1159, %v1257, %v1256
  %s1260 = scalar_lea.vmem %s2, 24
  %1261 = vst [vmem:[%s1260] sm:$0xff] %v1258
  %v1262 = vld [vmem:[#allocation4 + $0x4] sm:$0x1]
  %v1263 = vld [vmem:[#allocation4 + $0xc] sm:$0x1]
  %v1264 = vld [vmem:[#allocation4 + $0x14] sm:$0x1]
  %v1265 = vld [vmem:[#allocation4 + $0x1c] sm:$0x1]
  %v1266 = vld [vmem:[#allocation4 + $0x24] sm:$0x1]
  %v1267 = vld [vmem:[#allocation4 + $0x2c] sm:$0x1]
  %v1268 = vld [vmem:[#allocation4 + $0x34] sm:$0x1]
  %v1269 = vld [vmem:[#allocation4 + $0x3c] sm:$0x1]
  %v1278 = vrot.slane %v1263, 7
  %v1279 = vsel %vm1141, %v1278, %v1262
  %v1280 = vrot.slane %v1264, 6
  %v1281 = vsel %vm1144, %v1280, %v1279
  %v1282 = vrot.slane %v1265, 5
  %v1283 = vsel %vm1147, %v1282, %v1281
  %v1284 = vrot.slane %v1266, 4
  %v1285 = vsel %vm1150, %v1284, %v1283
  %v1286 = vrot.slane %v1267, 3
  %v1287 = vsel %vm1153, %v1286, %v1285
  %v1288 = vrot.slane %v1268, 2
  %v1289 = vsel %vm1156, %v1288, %v1287
  %v1290 = vrot.slane %v1269, 1
  %v1291 = vsel %vm1159, %v1290, %v1289
  %s1293 = scalar_lea.vmem %s2, 32
  %1294 = vst [vmem:[%s1293] sm:$0xff] %v1291
  %v1295 = vld [vmem:[#allocation4 + $0x5] sm:$0x1]
  %v1296 = vld [vmem:[#allocation4 + $0xd] sm:$0x1]
  %v1297 = vld [vmem:[#allocation4 + $0x15] sm:$0x1]
  %v1298 = vld [vmem:[#allocation4 + $0x1d] sm:$0x1]
  %v1299 = vld [vmem:[#allocation4 + $0x25] sm:$0x1]
  %v1300 = vld [vmem:[#allocation4 + $0x2d] sm:$0x1]
  %v1301 = vld [vmem:[#allocation4 + $0x35] sm:$0x1]
  %v1302 = vld [vmem:[#allocation4 + $0x3d] sm:$0x1]
  %v1311 = vrot.slane %v1296, 7
  %v1312 = vsel %vm1141, %v1311, %v1295
  %v1313 = vrot.slane %v1297, 6
  %v1314 = vsel %vm1144, %v1313, %v1312
  %v1315 = vrot.slane %v1298, 5
  %v1316 = vsel %vm1147, %v1315, %v1314
  %v1317 = vrot.slane %v1299, 4
  %v1318 = vsel %vm1150, %v1317, %v1316
  %v1319 = vrot.slane %v1300, 3
  %v1320 = vsel %vm1153, %v1319, %v1318
  %v1321 = vrot.slane %v1301, 2
  %v1322 = vsel %vm1156, %v1321, %v1320
  %v1323 = vrot.slane %v1302, 1
  %v1324 = vsel %vm1159, %v1323, %v1322
  %s1326 = scalar_lea.vmem %s2, 40
  %1327 = vst [vmem:[%s1326] sm:$0xff] %v1324
  %v1328 = vld [vmem:[#allocation4 + $0x6] sm:$0x1]
  %v1329 = vld [vmem:[#allocation4 + $0xe] sm:$0x1]
  %v1330 = vld [vmem:[#allocation4 + $0x16] sm:$0x1]
  %v1331 = vld [vmem:[#allocation4 + $0x1e] sm:$0x1]
  %v1332 = vld [vmem:[#allocation4 + $0x26] sm:$0x1]
  %v1333 = vld [vmem:[#allocation4 + $0x2e] sm:$0x1]
  %v1334 = vld [vmem:[#allocation4 + $0x36] sm:$0x1]
  %v1335 = vld [vmem:[#allocation4 + $0x3e] sm:$0x1]
  %v1344 = vrot.slane %v1329, 7
  %v1345 = vsel %vm1141, %v1344, %v1328
  %v1346 = vrot.slane %v1330, 6
  %v1347 = vsel %vm1144, %v1346, %v1345
  %v1348 = vrot.slane %v1331, 5
  %v1349 = vsel %vm1147, %v1348, %v1347
  %v1350 = vrot.slane %v1332, 4
  %v1351 = vsel %vm1150, %v1350, %v1349
  %v1352 = vrot.slane %v1333, 3
  %v1353 = vsel %vm1153, %v1352, %v1351
  %v1354 = vrot.slane %v1334, 2
  %v1355 = vsel %vm1156, %v1354, %v1353
  %v1356 = vrot.slane %v1335, 1
  %v1357 = vsel %vm1159, %v1356, %v1355
  %s1359 = scalar_lea.vmem %s2, 48
  %1360 = vst [vmem:[%s1359] sm:$0xff] %v1357
  %v1361 = vld [vmem:[#allocation4 + $0x7] sm:$0x1]
  %v1362 = vld [vmem:[#allocation4 + $0xf] sm:$0x1]
  %v1363 = vld [vmem:[#allocation4 + $0x17] sm:$0x1]
  %v1364 = vld [vmem:[#allocation4 + $0x1f] sm:$0x1]
  %v1365 = vld [vmem:[#allocation4 + $0x27] sm:$0x1]
  %v1366 = vld [vmem:[#allocation4 + $0x2f] sm:$0x1]
  %v1367 = vld [vmem:[#allocation4 + $0x37] sm:$0x1]
  %v1368 = vld [vmem:[#allocation4 + $0x3f] sm:$0x1]
  %v1377 = vrot.slane %v1362, 7
  %v1378 = vsel %vm1141, %v1377, %v1361
  %v1379 = vrot.slane %v1363, 6
  %v1380 = vsel %vm1144, %v1379, %v1378
  %v1381 = vrot.slane %v1364, 5
  %v1382 = vsel %vm1147, %v1381, %v1380
  %v1383 = vrot.slane %v1365, 4
  %v1384 = vsel %vm1150, %v1383, %v1382
  %v1385 = vrot.slane %v1366, 3
  %v1386 = vsel %vm1153, %v1385, %v1384
  %v1387 = vrot.slane %v1367, 2
  %v1388 = vsel %vm1156, %v1387, %v1386
  %v1389 = vrot.slane %v1368, 1
  %v1390 = vsel %vm1159, %v1389, %v1388
  %s1392 = scalar_lea.vmem %s2, 56
  %1393 = vst [vmem:[%s1392] sm:$0xff] %v1390
  // Predicated region
  $region14: #{vanilla_lstm_forward.1} parent=0 // pred_check
    _
  $region15: #{vanilla_lstm_forward.1} parent=0 // pred_check_branch
    %1395 = sbr.rel (0) target = $region17
  $region16: #{vanilla_lstm_forward.1} parent=0 // pred_region
    _
  $region17: #{vanilla_lstm_forward.1} parent=0 // pred_fallthru
    _
  // Predicated region
  $region18: #{vanilla_lstm_forward.1} parent=0 // pred_check
    _
  $region19: #{vanilla_lstm_forward.1} parent=0 // pred_check_branch
    %1397 = sbr.rel (0) target = $region21
  $region20: #{vanilla_lstm_forward.1} parent=0 // pred_region
    _
  $region21: #{vanilla_lstm_forward.1} parent=0 // pred_fallthru
    _

</llo_original>
